<compile_context>
chip_gen: v5e
topology: v5e:2x2
jax: 0.10.0
libtpu: 0.0.40
codegen_flags: <defaults>
</compile_context>

<pallas_src>
import jax
import jax.numpy as jnp
from jax import lax
from jax.experimental import pallas as pl
from jax.experimental.pallas import tpu as pltpu


# ---------------------------------------------------------------------------
# Small helpers.
# ---------------------------------------------------------------------------
def _round_up(x, m):
    return ((x + m - 1) // m) * m


def _vmem_capacity_bytes():
    try:
        return int(pltpu.get_tpu_info().vmem_capacity_bytes)
    except Exception:
        return 64 * 1024 * 1024  # conservative default (v7x per-core VMEM)


def _vmem_limit_bytes(footprint):
    cap = _vmem_capacity_bytes()
    want = int(footprint * 1.5) + (8 << 20)          # headroom for compiler scratch
    return int(max(16 << 20, min(want, (cap * 3) // 4)))  # never ask for all VMEM


def _pick_block_b(batch, act_bytes_per_row, budget):
    """Batch tile: one full block when B <= 512, else the largest 128-512
    divisor (multiple of 8) whose activation tiles fit the VMEM budget."""
    if batch <= 512:
        return batch
    cands = [t for t in (512, 384, 256, 128, 64, 32, 16, 8) if batch % t == 0]
    if not cands:
        return batch
    for tb in cands:
        if tb * act_bytes_per_row <= budget:
            return tb
    return cands[-1]


def _spec(shape, index_map, pipeline_mode=None):
    if pipeline_mode is None:
        return pl.BlockSpec(shape, index_map)
    return pl.BlockSpec(shape, index_map, pipeline_mode=pipeline_mode)


# ---------------------------------------------------------------------------
# Single-step kernel: one psRNNCell forward, batch-tiled grid.
# ---------------------------------------------------------------------------
def psrnn_cell_kernel(x_ref, h_ref, wi_ref, wh_ref, bao_ref, out_ref):
    # x_ref:  (TB, n_inp)      activation tile (pipelined over the batch grid)
    # h_ref:  (TB, nh)         state tile
    # wi_ref: (n_inp, nh)      Wi^T, VMEM-resident (constant index map)
    # wh_ref: (nh, nh)         Wh^T, VMEM-resident
    # bao_ref:(3, nh)          rows = [bias, A, omega], always f32
    x = x_ref[...]
    h32 = h_ref[...].astype(jnp.float32)

    bao = bao_ref[...]
    bias, a, omega = bao[0:1, :], bao[1:2, :], bao[2:3, :]

    # MXU matmuls in the weight dtype (f32 or bf16), f32 accumulation.
    mm_dt = wi_ref.dtype
    wi_x = jnp.dot(x.astype(mm_dt), wi_ref[...],
                   preferred_element_type=jnp.float32) + bias
    wh_h = jnp.dot(h_ref[...].astype(mm_dt), wh_ref[...],
                   preferred_element_type=jnp.float32)

    # Epilogue in f32 (cos phase must stay f32 for accuracy).
    out_ref[...] = (a * jnp.cos(omega * h32 + wi_x) + wh_h).astype(out_ref.dtype)


def psrnn_cell(x, state, wi_t, bias, wh_t, a, omega, *,
               block_b=None, weight_dtype=None, donate_state=False):
    """One psRNNCell step.

    x: (B, n_inp), state: (B, n_hid), wi_t = Wi.weight.T (n_inp, n_hid),
    bias = Wi.bias (n_hid,), wh_t = Wh.weight.T (n_hid, n_hid), a/omega (n_hid,).
    Returns (B, n_hid) with the dtype of `state`.
    """
    B, n_inp = x.shape
    n_hid = state.shape[-1]
    out_dtype = state.dtype

    # Lane-dense hidden dim (multiple of 128); padded rows/cols are exact zeros
    # so the un-padded result is unchanged.
    nh = _round_up(n_hid, 128)
    if nh != n_hid:
        p = nh - n_hid
        state = jnp.pad(state, ((0, 0), (0, p)))
        wi_t = jnp.pad(wi_t, ((0, 0), (0, p)))
        wh_t = jnp.pad(wh_t, ((0, p), (0, p)))
        bias = jnp.pad(bias.reshape(-1), (0, p))
        a = jnp.pad(a.reshape(-1), (0, p))
        omega = jnp.pad(omega.reshape(-1), (0, p))

    if weight_dtype is not None:
        wi_t = wi_t.astype(weight_dtype)
        wh_t = wh_t.astype(weight_dtype)
    wbytes = jnp.dtype(wi_t.dtype).itemsize

    bao = jnp.stack([bias.reshape(-1), a.reshape(-1), omega.reshape(-1)],
                    axis=0).astype(jnp.float32)                      # (3, nh)

    # VMEM-aware batch tile.
    cap = _vmem_capacity_bytes()
    weight_bytes = (n_inp * nh + nh * nh) * wbytes + 3 * nh * 4      # single-buffered
    act_row = 2 * (n_inp * x.dtype.itemsize
                   + nh * state.dtype.itemsize
                   + nh * jnp.dtype(out_dtype).itemsize)             # double-buffered
    budget = max((cap * 3) // 5 - weight_bytes, 1 << 20)
    tb = block_b if block_b is not None else _pick_block_b(B, act_row, budget)
    grid = (B // tb,)

    footprint = weight_bytes + tb * act_row
    params = pltpu.CompilerParams(
        dimension_semantics=("parallel",),
        vmem_limit_bytes=_vmem_limit_bytes(footprint),
    )
    aliases = {1: 0} if donate_state else {}

    def run(single_buffer_weights):
        pm = pl.Buffered(1) if single_buffer_weights else None
        return pl.pallas_call(
            psrnn_cell_kernel,
            out_shape=jax.ShapeDtypeStruct((B, nh), out_dtype),
            grid_spec=pltpu.PrefetchScalarGridSpec(
                num_scalar_prefetch=0,
                grid=grid,
                in_specs=[
                    _spec((tb, n_inp), lambda i: (i, 0)),           # x tile
                    _spec((tb, nh), lambda i: (i, 0)),              # state tile
                    _spec((n_inp, nh), lambda i: (0, 0), pm),       # Wi^T resident
                    _spec((nh, nh), lambda i: (0, 0), pm),          # Wh^T resident
                    _spec((3, nh), lambda i: (0, 0), pm),           # [bias, A, omega]
                ],
                out_specs=_spec((tb, nh), lambda i: (i, 0)),
            ),
            compiler_params=params,
            input_output_aliases=aliases,
        )(x, state, wi_t, wh_t, bao)

    try:
        out = run(True)
    except Exception:
        # Fallback if single-buffered pipeline_mode is unsupported on this jax.
        out = run(False)
    return out[:, :n_hid] if nh != n_hid else out


# ---------------------------------------------------------------------------
# Recurrent kernel: hoisted input projection, blocked time axis, state in VMEM.
# ---------------------------------------------------------------------------
def psrnn_scan_kernel(u_ref, h0_ref, wh_ref, ao_ref, out_ref, state_scr):
    # u_ref:     (TT, TB, nh) f32 precomputed  Wi@x_t + bias  for TT timesteps
    # h0_ref:    (TB, nh)         initial state for this batch block
    # wh_ref:    (nh, nh)         Wh^T, VMEM-resident
    # ao_ref:    (2, nh) f32      rows = [A, omega]
    # out_ref:   (TT, TB, nh)
    # state_scr: (TB, nh) f32     carried hidden state (persists over time grid)
    @pl.when(pl.program_id(1) == 0)
    def _():
        state_scr[...] = h0_ref[...].astype(jnp.float32)

    shape = state_scr.shape
    ao = ao_ref[...]
    a = jnp.broadcast_to(ao[0:1, :], shape)       # hoisted out of the time loop
    omega = jnp.broadcast_to(ao[1:2, :], shape)
    wh = wh_ref[...]
    mm_dt = wh.dtype

    def step(i, h):
        wh_h = jnp.dot(h.astype(mm_dt), wh, preferred_element_type=jnp.float32)
        new_h = a * jnp.cos(omega * h + u_ref[i]) + wh_h
        out_ref[i] = new_h.astype(out_ref.dtype)
        return new_h

    state_scr[...] = lax.fori_loop(0, u_ref.shape[0], step, state_scr[...],
                                   unroll=True)


def psrnn_scan(xs, h0, wi_t, bias, wh_t, a, omega, *,
               block_t=None, block_b=None, weight_dtype=None):
    """Run the psRNNCell recurrence over a sequence.

    xs: (T, B, n_inp), h0: (B, n_hid). Returns all states, shape (T, B, n_hid).
    """
    T, B, n_inp = xs.shape
    n_hid = h0.shape[-1]
    out_dtype = h0.dtype

    # Wi@x does not depend on h: hoist it off the recurrent critical path as one
    # large batched matmul (full MXU efficiency, pipelines in XLA). f32 result so
    # the cos phase stays f32 inside the kernel.
    u = (jnp.dot(xs.reshape(T * B, n_inp).astype(jnp.float32),
                 wi_t.astype(jnp.float32),
                 preferred_element_type=jnp.float32)
         + bias.reshape(1, -1).astype(jnp.float32)).reshape(T, B, n_hid)

    nh = _round_up(n_hid, 128)
    if nh != n_hid:
        p = nh - n_hid
        u = jnp.pad(u, ((0, 0), (0, 0), (0, p)))
        h0 = jnp.pad(h0, ((0, 0), (0, p)))
        wh_t = jnp.pad(wh_t, ((0, p), (0, p)))
        a = jnp.pad(a.reshape(-1), (0, p))
        omega = jnp.pad(omega.reshape(-1), (0, p))

    if weight_dtype is not None:
        wh_t = wh_t.astype(weight_dtype)
    wbytes = jnp.dtype(wh_t.dtype).itemsize
    ao = jnp.stack([a.reshape(-1), omega.reshape(-1)], axis=0).astype(jnp.float32)

    # Time blocking: TT timesteps per grid step to amortize per-step overhead.
    tt = block_t if block_t is not None else next(
        t for t in (32, 16, 8, 4, 2, 1) if T % t == 0)

    # Batch tile -> parallel grid axis (uses both TensorCores on v7x) and bounds
    # per-core VMEM.
    cap = _vmem_capacity_bytes()
    weight_bytes = nh * nh * wbytes + 2 * nh * 4
    act_row = (2 * tt * nh * 4                                  # u, double-buffered
               + 2 * tt * nh * jnp.dtype(out_dtype).itemsize    # out, double-buffered
               + 2 * nh * jnp.dtype(h0.dtype).itemsize          # h0
               + nh * 4)                                        # carried-state scratch
    budget = max((cap * 3) // 5 - weight_bytes, 1 << 20)
    tb = block_b if block_b is not None else _pick_block_b(B, act_row, budget)
    grid = (B // tb, T // tt)

    footprint = weight_bytes + tb * act_row
    params = pltpu.CompilerParams(
        dimension_semantics=("parallel", "arbitrary"),   # batch parallel, time serial
        vmem_limit_bytes=_vmem_limit_bytes(footprint),
    )

    def run(single_buffer_weights):
        pm = pl.Buffered(1) if single_buffer_weights else None
        return pl.pallas_call(
            psrnn_scan_kernel,
            out_shape=jax.ShapeDtypeStruct((T, B, nh), out_dtype),
            grid_spec=pltpu.PrefetchScalarGridSpec(
                num_scalar_prefetch=0,
                grid=grid,
                in_specs=[
                    _spec((tt, tb, nh), lambda b, t: (t, b, 0)),    # U_t block
                    _spec((tb, nh), lambda b, t: (b, 0)),           # h0 block
                    _spec((nh, nh), lambda b, t: (0, 0), pm),       # Wh^T resident
                    _spec((2, nh), lambda b, t: (0, 0), pm),        # [A, omega]
                ],
                out_specs=_spec((tt, tb, nh), lambda b, t: (t, b, 0)),
                scratch_shapes=[pltpu.VMEM((tb, nh), jnp.float32)],
            ),
            compiler_params=params,
        )(u, h0, wh_t, ao)

    try:
        outs = run(True)
    except Exception:
        outs = run(False)
    return outs[..., :n_hid] if nh != n_hid else outs


# ---------------------------------------------------------------------------
# Plain-JAX references mirroring the PyTorch forward.
# ---------------------------------------------------------------------------
def psrnn_cell_ref(x, state, wi_t, bias, wh_t, a, omega):
    wi_x = jnp.dot(x.astype(wi_t.dtype), wi_t,
                   preferred_element_type=jnp.float32) + bias
    wh_h = jnp.dot(state.astype(wh_t.dtype), wh_t,
                   preferred_element_type=jnp.float32)
    return a * jnp.cos(omega * state + wi_x) + wh_h


def psrnn_scan_ref(xs, h0, wi_t, bias, wh_t, a, omega):
    def step(h, x):
        h_new = psrnn_cell_ref(x, h, wi_t, bias, wh_t, a, omega)
        return h_new, h_new
    _, ys = lax.scan(step, h0, xs)
    return ys


if __name__ == "__main__":
    key = jax.random.PRNGKey(0)
    # Small, lane-dense shapes: n_hid = 128 keeps the output store full width.
    B, n_inp, n_hid, T = 64, 16, 128, 8

    keys = jax.random.split(key, 8)
    x = jax.random.normal(keys[0], (B, n_inp), jnp.float32)
    state = jax.random.normal(keys[1], (B, n_hid), jnp.float32)
    xs = jax.random.normal(keys[7], (T, B, n_inp), jnp.float32)

    # Parameter init matching the module (Wi bias=True, Wh bias=False,
    # A/omega ~ U[0,1) like torch.rand).
    bound_i = 1.0 / jnp.sqrt(n_inp)
    bound_h = 1.0 / jnp.sqrt(n_hid)
    wi = jax.random.uniform(keys[2], (n_hid, n_inp), jnp.float32, -bound_i, bound_i)
    bias = jax.random.uniform(keys[3], (n_hid,), jnp.float32, -bound_i, bound_i)
    wh = jax.random.uniform(keys[4], (n_hid, n_hid), jnp.float32, -bound_h, bound_h)
    a = jax.random.uniform(keys[5], (n_hid,), jnp.float32)
    omega = jax.random.uniform(keys[6], (n_hid,), jnp.float32)

    wi_t = wi.T   # (n_inp, n_hid)
    wh_t = wh.T   # (n_hid, n_hid)

    # --- single step, f32 weights (single full-batch tile since B <= 512) ---
    out = jax.block_until_ready(psrnn_cell(x, state, wi_t, bias, wh_t, a, omega))
    ref = psrnn_cell_ref(x, state, wi_t, bias, wh_t, a, omega)
    assert out.shape == (B, n_hid)
    assert jnp.allclose(out, ref, atol=1e-3, rtol=1e-3), "f32 single-step mismatch"

    # --- single step, bf16 weights on the MXU (f32 accumulate + f32 epilogue) ---
    out_bf = jax.block_until_ready(
        psrnn_cell(x, state, wi_t, bias, wh_t, a, omega,
                   weight_dtype=jnp.bfloat16))
    ref_bf = psrnn_cell_ref(x, state, wi_t.astype(jnp.bfloat16), bias,
                            wh_t.astype(jnp.bfloat16), a, omega)
    assert jnp.allclose(out_bf, ref_bf, atol=1e-2, rtol=1e-2), \
        "bf16 single-step mismatch"

    # --- non-multiple-of-128 hidden size (exercises lane-dense padding path) ---
    nh2, B2 = 96, 16
    k2 = jax.random.split(keys[7], 7)
    x2 = jax.random.normal(k2[0], (B2, n_inp), jnp.float32)
    h2 = jax.random.normal(k2[1], (B2, nh2), jnp.float32)
    wi2 = jax.random.uniform(k2[2], (n_inp, nh2), jnp.float32, -bound_i, bound_i)
    b2 = jax.random.uniform(k2[3], (nh2,), jnp.float32, -bound_i, bound_i)
    wh2 = jax.random.uniform(k2[4], (nh2, nh2), jnp.float32, -0.1, 0.1)
    a2 = jax.random.uniform(k2[5], (nh2,), jnp.float32)
    om2 = jax.random.uniform(k2[6], (nh2,), jnp.float32)
    out2 = jax.block_until_ready(psrnn_cell(x2, h2, wi2, b2, wh2, a2, om2))
    ref2 = psrnn_cell_ref(x2, h2, wi2, b2, wh2, a2, om2)
    assert out2.shape == (B2, nh2)
    assert jnp.allclose(out2, ref2, atol=1e-3, rtol=1e-3), "padded-hid mismatch"

    # --- full recurrence: hoisted Wi@x + bias, blocked time axis, one kernel ---
    outs = jax.block_until_ready(psrnn_scan(xs, state, wi_t, bias, wh_t, a, omega))
    refs = psrnn_scan_ref(xs, state, wi_t, bias, wh_t, a, omega)
    assert outs.shape == (T, B, n_hid)
    assert jnp.allclose(outs, refs, atol=2e-2, rtol=2e-2), "scan mismatch"

    print("KERNEL_OK")
</pallas_src>

<mosaic_0001>
module attributes {stable_mosaic.version = 11 : i64} {
  func.func @psrnn_cell_kernel(%arg0: i32, %arg1: memref<64x16xf32, #tpu.memory_space<vmem>>, %arg2: memref<64x128xf32, #tpu.memory_space<vmem>>, %arg3: memref<16x128xf32, #tpu.memory_space<vmem>>, %arg4: memref<128x128xf32, #tpu.memory_space<vmem>>, %arg5: memref<3x128xf32, #tpu.memory_space<vmem>>, %arg6: memref<64x128xf32, #tpu.memory_space<vmem>>) attributes {dimension_semantics = [#tpu.dimension_semantics<parallel>], iteration_bounds = array<i64: 1>, scalar_prefetch = 0 : i64, scratch_operands = 0 : i64, tpu.core_type = #tpu.core_type<tc>, window_params = [{transform_indices = @transform_0, window_bounds = array<i64: 64, 16>}, {transform_indices = @transform_1, window_bounds = array<i64: 64, 128>}, {pipeline_mode = #tpu.pipeline_mode<synchronous>, transform_indices = @transform_2, window_bounds = array<i64: 16, 128>}, {pipeline_mode = #tpu.pipeline_mode<synchronous>, transform_indices = @transform_3, window_bounds = array<i64: 128, 128>}, {pipeline_mode = #tpu.pipeline_mode<synchronous>, transform_indices = @transform_4, window_bounds = array<i64: 3, 128>}, {transform_indices = @transform_5, window_bounds = array<i64: 64, 128>}]} {
    %c0 = arith.constant 0 : index
    %c0_0 = arith.constant 0 : index
    %0 = vector.load %arg1[%c0, %c0_0] : memref<64x16xf32, #tpu.memory_space<vmem>>, vector<64x16xf32>
    %c0_1 = arith.constant 0 : index
    %c0_2 = arith.constant 0 : index
    %1 = vector.load %arg2[%c0_1, %c0_2] : memref<64x128xf32, #tpu.memory_space<vmem>>, vector<64x128xf32>
    %c0_3 = arith.constant 0 : index
    %c0_4 = arith.constant 0 : index
    %2 = vector.load %arg5[%c0_3, %c0_4] : memref<3x128xf32, #tpu.memory_space<vmem>>, vector<3x128xf32>
    %3 = vector.extract_strided_slice %2 {offsets = [0, 0], sizes = [1, 128], strides = [1, 1]} : vector<3x128xf32> to vector<1x128xf32>
    %4 = vector.extract_strided_slice %2 {offsets = [1, 0], sizes = [1, 128], strides = [1, 1]} : vector<3x128xf32> to vector<1x128xf32>
    %5 = vector.extract_strided_slice %2 {offsets = [2, 0], sizes = [1, 128], strides = [1, 1]} : vector<3x128xf32> to vector<1x128xf32>
    %c0_5 = arith.constant 0 : index
    %c0_6 = arith.constant 0 : index
    %6 = vector.load %arg3[%c0_5, %c0_6] : memref<16x128xf32, #tpu.memory_space<vmem>>, vector<16x128xf32>
    %cst = arith.constant dense<0.000000e+00> : vector<64x128xf32>
    %7 = tpu.matmul %0, %6, %cst {dimension_numbers = #tpu.dot_dimension_numbers<[1], [0], [0], [1], [0, 0, 1, 1], [], []>} : vector<64x16xf32>, vector<16x128xf32>, vector<64x128xf32> -> vector<64x128xf32>
    %8 = vector.broadcast %3 : vector<1x128xf32> to vector<64x128xf32>
    %9 = arith.addf %7, %8 : vector<64x128xf32>
    %c0_7 = arith.constant 0 : index
    %c0_8 = arith.constant 0 : index
    %10 = vector.load %arg2[%c0_7, %c0_8] : memref<64x128xf32, #tpu.memory_space<vmem>>, vector<64x128xf32>
    %c0_9 = arith.constant 0 : index
    %c0_10 = arith.constant 0 : index
    %11 = vector.load %arg4[%c0_9, %c0_10] : memref<128x128xf32, #tpu.memory_space<vmem>>, vector<128x128xf32>
    %cst_11 = arith.constant dense<0.000000e+00> : vector<64x128xf32>
    %12 = tpu.matmul %10, %11, %cst_11 {dimension_numbers = #tpu.dot_dimension_numbers<[1], [0], [0], [1], [0, 0, 1, 1], [], []>} : vector<64x128xf32>, vector<128x128xf32>, vector<64x128xf32> -> vector<64x128xf32>
    %13 = vector.broadcast %5 : vector<1x128xf32> to vector<64x128xf32>
    %14 = arith.mulf %13, %1 : vector<64x128xf32>
    %15 = arith.addf %14, %9 : vector<64x128xf32>
    %16 = math.cos %15 : vector<64x128xf32>
    %17 = vector.broadcast %4 : vector<1x128xf32> to vector<64x128xf32>
    %18 = arith.mulf %17, %16 : vector<64x128xf32>
    %19 = arith.addf %18, %12 : vector<64x128xf32>
    %c0_12 = arith.constant 0 : index
    %c0_13 = arith.constant 0 : index
    %20 = vector.load %arg6[%c0_12, %c0_13] : memref<64x128xf32, #tpu.memory_space<vmem>>, vector<64x128xf32>
    tpu.vector_store %arg6[%c0_12, %c0_13], %19 {strides = array<i32>} : memref<64x128xf32, #tpu.memory_space<vmem>>, vector<64x128xf32>,
    return
  }
  func.func @transform_0(%arg0: i32) -> (i32, i32) {
    %c0_i32 = arith.constant 0 : i32
    %c0_i32_0 = arith.constant 0 : i32
    return %arg0, %c0_i32 : i32, i32
  }
  func.func @transform_1(%arg0: i32) -> (i32, i32) {
    %c0_i32 = arith.constant 0 : i32
    %c0_i32_0 = arith.constant 0 : i32
    return %arg0, %c0_i32 : i32, i32
  }
  func.func @transform_2(%arg0: i32) -> (i32, i32) {
    %c0_i32 = arith.constant 0 : i32
    %c0_i32_0 = arith.constant 0 : i32
    %c0_i32_1 = arith.constant 0 : i32
    return %c0_i32, %c0_i32_0 : i32, i32
  }
  func.func @transform_3(%arg0: i32) -> (i32, i32) {
    %c0_i32 = arith.constant 0 : i32
    %c0_i32_0 = arith.constant 0 : i32
    %c0_i32_1 = arith.constant 0 : i32
    return %c0_i32, %c0_i32_0 : i32, i32
  }
  func.func @transform_4(%arg0: i32) -> (i32, i32) {
    %c0_i32 = arith.constant 0 : i32
    %c0_i32_0 = arith.constant 0 : i32
    %c0_i32_1 = arith.constant 0 : i32
    return %c0_i32, %c0_i32_0 : i32, i32
  }
  func.func @transform_5(%arg0: i32) -> (i32, i32) {
    %c0_i32 = arith.constant 0 : i32
    %c0_i32_0 = arith.constant 0 : i32
    return %arg0, %c0_i32 : i32, i32
  }
}

module attributes {stable_mosaic.version = 11 : i64} {
  func.func @psrnn_cell_kernel(%arg0: i32, %arg1: memref<64x16xf32, #tpu.memory_space<vmem>>, %arg2: memref<64x128xf32, #tpu.memory_space<vmem>>, %arg3: memref<16x128xf32, #tpu.memory_space<vmem>>, %arg4: memref<128x128xf32, #tpu.memory_space<vmem>>, %arg5: memref<3x128xf32, #tpu.memory_space<vmem>>, %arg6: memref<64x128xf32, #tpu.memory_space<vmem>>) attributes {dimension_semantics = [#tpu.dimension_semantics<parallel>], iteration_bounds = array<i64: 1>, scalar_prefetch = 0 : i64, scratch_operands = 0 : i64, tpu.core_type = #tpu.core_type<tc>, window_params = [{transform_indices = @transform_0, window_bounds = array<i64: 64, 16>}, {transform_indices = @transform_1, window_bounds = array<i64: 64, 128>}, {pipeline_mode = #tpu.pipeline_mode<synchronous>, transform_indices = @transform_2, window_bounds = array<i64: 16, 128>}, {pipeline_mode = #tpu.pipeline_mode<synchronous>, transform_indices = @transform_3, window_bounds = array<i64: 128, 128>}, {pipeline_mode = #tpu.pipeline_mode<synchronous>, transform_indices = @transform_4, window_bounds = array<i64: 3, 128>}, {transform_indices = @transform_5, window_bounds = array<i64: 64, 128>}]} {
    %c0 = arith.constant 0 : index
    %c0_0 = arith.constant 0 : index
    %0 = vector.load %arg1[%c0, %c0_0] : memref<64x16xf32, #tpu.memory_space<vmem>>, vector<64x16xf32>
    %c0_1 = arith.constant 0 : index
    %c0_2 = arith.constant 0 : index
    %1 = vector.load %arg2[%c0_1, %c0_2] : memref<64x128xf32, #tpu.memory_space<vmem>>, vector<64x128xf32>
    %c0_3 = arith.constant 0 : index
    %c0_4 = arith.constant 0 : index
    %2 = vector.load %arg5[%c0_3, %c0_4] : memref<3x128xf32, #tpu.memory_space<vmem>>, vector<3x128xf32>
    %3 = vector.extract_strided_slice %2 {offsets = [0, 0], sizes = [1, 128], strides = [1, 1]} : vector<3x128xf32> to vector<1x128xf32>
    %4 = vector.extract_strided_slice %2 {offsets = [1, 0], sizes = [1, 128], strides = [1, 1]} : vector<3x128xf32> to vector<1x128xf32>
    %5 = vector.extract_strided_slice %2 {offsets = [2, 0], sizes = [1, 128], strides = [1, 1]} : vector<3x128xf32> to vector<1x128xf32>
    %c0_5 = arith.constant 0 : index
    %c0_6 = arith.constant 0 : index
    %6 = vector.load %arg3[%c0_5, %c0_6] : memref<16x128xf32, #tpu.memory_space<vmem>>, vector<16x128xf32>
    %cst = arith.constant dense<0.000000e+00> : vector<64x128xf32>
    %7 = tpu.matmul %0, %6, %cst {dimension_numbers = #tpu.dot_dimension_numbers<[1], [0], [0], [1], [0, 0, 1, 1], [], []>} : vector<64x16xf32>, vector<16x128xf32>, vector<64x128xf32> -> vector<64x128xf32>
    %8 = vector.broadcast %3 : vector<1x128xf32> to vector<64x128xf32>
    %9 = arith.addf %7, %8 : vector<64x128xf32>
    %c0_7 = arith.constant 0 : index
    %c0_8 = arith.constant 0 : index
    %10 = vector.load %arg2[%c0_7, %c0_8] : memref<64x128xf32, #tpu.memory_space<vmem>>, vector<64x128xf32>
    %c0_9 = arith.constant 0 : index
    %c0_10 = arith.constant 0 : index
    %11 = vector.load %arg4[%c0_9, %c0_10] : memref<128x128xf32, #tpu.memory_space<vmem>>, vector<128x128xf32>
    %cst_11 = arith.constant dense<0.000000e+00> : vector<64x128xf32>
    %12 = tpu.matmul %10, %11, %cst_11 {dimension_numbers = #tpu.dot_dimension_numbers<[1], [0], [0], [1], [0, 0, 1, 1], [], []>} : vector<64x128xf32>, vector<128x128xf32>, vector<64x128xf32> -> vector<64x128xf32>
    %13 = vector.broadcast %5 : vector<1x128xf32> to vector<64x128xf32>
    %14 = arith.mulf %13, %1 : vector<64x128xf32>
    %15 = arith.addf %14, %9 : vector<64x128xf32>
    %16 = math.cos %15 : vector<64x128xf32>
    %17 = vector.broadcast %4 : vector<1x128xf32> to vector<64x128xf32>
    %18 = arith.mulf %17, %16 : vector<64x128xf32>
    %19 = arith.addf %18, %12 : vector<64x128xf32>
    %c0_12 = arith.constant 0 : index
    %c0_13 = arith.constant 0 : index
    %20 = vector.load %arg6[%c0_12, %c0_13] : memref<64x128xf32, #tpu.memory_space<vmem>>, vector<64x128xf32>
    tpu.vector_store %arg6[%c0_12, %c0_13], %19 {strides = array<i32>} : memref<64x128xf32, #tpu.memory_space<vmem>>, vector<64x128xf32>,
    return
  }
  func.func @transform_0(%arg0: i32) -> (i32, i32) {
    %c0_i32 = arith.constant 0 : i32
    %c0_i32_0 = arith.constant 0 : i32
    return %arg0, %c0_i32 : i32, i32
  }
  func.func @transform_1(%arg0: i32) -> (i32, i32) {
    %c0_i32 = arith.constant 0 : i32
    %c0_i32_0 = arith.constant 0 : i32
    return %arg0, %c0_i32 : i32, i32
  }
  func.func @transform_2(%arg0: i32) -> (i32, i32) {
    %c0_i32 = arith.constant 0 : i32
    %c0_i32_0 = arith.constant 0 : i32
    %c0_i32_1 = arith.constant 0 : i32
    return %c0_i32, %c0_i32_0 : i32, i32
  }
  func.func @transform_3(%arg0: i32) -> (i32, i32) {
    %c0_i32 = arith.constant 0 : i32
    %c0_i32_0 = arith.constant 0 : i32
    %c0_i32_1 = arith.constant 0 : i32
    return %c0_i32, %c0_i32_0 : i32, i32
  }
  func.func @transform_4(%arg0: i32) -> (i32, i32) {
    %c0_i32 = arith.constant 0 : i32
    %c0_i32_0 = arith.constant 0 : i32
    %c0_i32_1 = arith.constant 0 : i32
    return %c0_i32, %c0_i32_0 : i32, i32
  }
  func.func @transform_5(%arg0: i32) -> (i32, i32) {
    %c0_i32 = arith.constant 0 : i32
    %c0_i32_0 = arith.constant 0 : i32
    return %arg0, %c0_i32 : i32, i32
  }
}

</mosaic_0001>

<llo_original>
// kernel: tpu_custom_call.1
$region0: #{tpu_custom_call.1}
  #allocation0 [shape = 'u32[]', space=smem, size = 0x4, offset = 0x4, fixed_abs, tag = 'smem constant byte address 0x4 - core index']
  #allocation1 [shape = 'u32[72,128]{1,0:T(1,128)}', space=vmem, size = 0x9000, scoped, tag = 'internal scratch']
  %s0 = inlined_call_operand.vmem [shape: f32[64,16], index: 0, kind: input, shape index: {}]
  %s1 = inlined_call_operand.vmem [shape: f32[64,128], index: 1, kind: input, shape index: {}]
  %s2 = inlined_call_operand.vmem [shape: f32[16,128], index: 2, kind: input, shape index: {}]
  %s3 = inlined_call_operand.hbm [shape: f32[128,128], index: 3, kind: input, shape index: {}]
  %s4 = inlined_call_operand.hbm [shape: f32[3,128], index: 4, kind: input, shape index: {}]
  %s5 = inlined_call_operand.hbm [shape: f32[64,128], index: 5, kind: output, shape index: {}]
  %s6 = sld [smem:[#allocation0]]
  $region38: #{tpu_custom_call.1} parent=0
    _
  %s8 = ssub.s32 1, %s6
  %s9 = scalar_select 0, %s8, %s6
  $region1: #{tpu_custom_call.1} parent=0
    #allocation2 [shape = 'u8[65536]{0}', space=vmem, size = 0x10000, scoped, tag = 'input window, operand 3, single buffered']
    #allocation3 [shape = 's32[1]{0}', space=sflag, size = 0x4, scoped, tag = 'scoped memory for tpu_custom_call.1']
    #allocation4 [shape = 's32[1]{0}', space=sflag, size = 0x4, scoped, tag = 'scoped memory for tpu_custom_call.1']
    #allocation5 [shape = 'u8[2048]{0}', space=vmem, size = 0x800, scoped, tag = 'input window, operand 4, single buffered']
    #allocation6 [shape = 's32[1]{0}', space=sflag, size = 0x4, scoped, tag = 'scoped memory for tpu_custom_call.1']
    #allocation7 [shape = 'u8[32768]{0}', space=vmem, size = 0x8000, scoped, tag = 'output window, operand 0, single buffered']
    %10 = vsyncpa [#allocation3], 0
    %11 = vsyncpa [#allocation6], 0
    %12 = vsyncpa [#allocation4], 0
    // Predicated region
    $region2: #{tpu_custom_call.1} parent=1 // pred_check
      _
    $region3: #{tpu_custom_call.1} parent=1 // pred_check_branch
      %14 = sbr.rel (0) target = $region5
    $region4: #{tpu_custom_call.1} parent=1 // pred_region
      _
    $region5: #{tpu_custom_call.1} parent=1 // pred_fallthru
      _
    // Predicated region
    $region6: #{tpu_custom_call.1} parent=1 // pred_check
      _
    $region7: #{tpu_custom_call.1} parent=1 // pred_check_branch
      %16 = sbr.rel (0) target = $region9
    $region8: #{tpu_custom_call.1} parent=1 // pred_region
      _
    $region9: #{tpu_custom_call.1} parent=1 // pred_fallthru
      _
    // Predicated region
    $region10: #{tpu_custom_call.1} parent=1 // pred_check
      _
    $region11: #{tpu_custom_call.1} parent=1 // pred_check_branch
      %18 = sbr.rel (0) target = $region13
    $region12: #{tpu_custom_call.1} parent=1 // pred_region
      _
    $region13: #{tpu_custom_call.1} parent=1 // pred_fallthru
      _
    // Predicated region
    $region14: #{tpu_custom_call.1} parent=1 // pred_check
      _
    $region15: #{tpu_custom_call.1} parent=1 // pred_check_branch
      %20 = sbr.rel (0) target = $region17
    $region16: #{tpu_custom_call.1} parent=1 // pred_region
      %22 = vsyncadd [#allocation3], 0
      %s23 = sshll.u32 %s3, 4
      %s24 = int_to_ptr.hbm [resolvable:$true] %s23
      %s25 = sshll.u32 [#allocation2], 4
      %s26 = int_to_ptr.vmem [resolvable:$true] %s25
      %31 = dma.hbm_to_vmem [thread:$0]  %s24, 2048, %s26, [#allocation3], 128, 128, 8
    $region17: #{tpu_custom_call.1} parent=1 // pred_fallthru
      _
    // Predicated region
    $region18: #{tpu_custom_call.1} parent=1 // pred_check
      _
    $region19: #{tpu_custom_call.1} parent=1 // pred_check_branch
      %33 = sbr.rel (0) target = $region21
    $region20: #{tpu_custom_call.1} parent=1 // pred_region
      %35 = vsyncadd [#allocation6], 0
      %s37 = sshll.u32 %s4, 4
      %s38 = int_to_ptr.hbm [resolvable:$true] %s37
      %s39 = sshll.u32 [#allocation5], 4
      %s40 = int_to_ptr.vmem [resolvable:$true] %s39
      %42 = dma.hbm_to_vmem [thread:$0]  %s38, 64, %s40, [#allocation6]
    $region21: #{tpu_custom_call.1} parent=1 // pred_fallthru
      _
    // Predicated region
    $region22: #{tpu_custom_call.1} parent=1 // pred_check
      _
    $region23: #{tpu_custom_call.1} parent=1 // pred_check_branch
      %44 = sbr.rel (0) target = $region25
    $region24: #{tpu_custom_call.1} parent=1 // pred_region
      %46 = dma.done [#allocation3], 2048
    $region25: #{tpu_custom_call.1} parent=1 // pred_fallthru
      _
    // Predicated region
    $region26: #{tpu_custom_call.1} parent=1 // pred_check
      _
    $region27: #{tpu_custom_call.1} parent=1 // pred_check_branch
      %48 = sbr.rel (0) target = $region29
    $region28: #{tpu_custom_call.1} parent=1 // pred_region
      %50 = dma.done [#allocation6], 64
    $region29: #{tpu_custom_call.1} parent=1 // pred_fallthru
      _
    %v51 = vld [vmem:[%s0] sm:$0xff]
    %v52 = vld [vmem:[%s0 + $0x8] sm:$0xff]
    %v53 = vld [vmem:[%s0 + $0x10] sm:$0xff]
    %v54 = vld [vmem:[%s0 + $0x18] sm:$0xff]
    %v55 = vld [vmem:[%s0 + $0x20] sm:$0xff]
    %v56 = vld [vmem:[%s0 + $0x28] sm:$0xff]
    %v57 = vld [vmem:[%s0 + $0x30] sm:$0xff]
    %v58 = vld [vmem:[%s0 + $0x38] sm:$0xff]
    %v59 = vld [vmem:[%s1] sm:$0xff]
    %v60 = vld [vmem:[%s1 + $0x8] sm:$0xff]
    %v61 = vld [vmem:[%s1 + $0x10] sm:$0xff]
    %v62 = vld [vmem:[%s1 + $0x18] sm:$0xff]
    %v63 = vld [vmem:[%s1 + $0x20] sm:$0xff]
    %v64 = vld [vmem:[%s1 + $0x28] sm:$0xff]
    %v65 = vld [vmem:[%s1 + $0x30] sm:$0xff]
    %v66 = vld [vmem:[%s1 + $0x38] sm:$0xff]
    %v67 = vld [vmem:[#allocation5] sm:$0x7]
    %v68 = vld [vmem:[%s2] sm:$0xff]
    %v69 = vld [vmem:[%s2 + $0x8] sm:$0xff]
    %v70 = vperm.slane %v67, 0
    %vm71 = vcmask 130048
    %v73 = vsel %vm71, %v51, 0
    %v76 = vsel %vm71, %v52, 0
    %v79 = vsel %vm71, %v53, 0
    %v82 = vsel %vm71, %v54, 0
    %v85 = vsel %vm71, %v55, 0
    %v88 = vsel %vm71, %v56, 0
    %v91 = vsel %vm71, %v57, 0
    %v94 = vsel %vm71, %v58, 0
    %96 = vmatpush.msra.mxu0 0.0
    %97 = vmatpush.msra.mxu0 0.0
    %98 = vmatpush.msra.mxu0 0.0
    %99 = vmatpush.msra.mxu0 0.0
    %100 = vmatpush.msra.mxu0 0.0
    %101 = vmatpush.msra.mxu0 0.0
    %102 = vmatpush.msra.mxu0 0.0
    %103 = vmatpush.msra.mxu0 0.0
    %104 = vmatpush.msra.mxu0 0.0
    %105 = vmatpush.msra.mxu0 0.0
    %106 = vmatpush.msra.mxu0 0.0
    %107 = vmatpush.msra.mxu0 0.0
    %108 = vmatpush.msra.mxu0 0.0
    %109 = vmatpush.msra.mxu0 0.0
    %110 = vmatpush.msra.mxu0 %v69
    %111 = vmatpush.msra.mxu0 %v68
    %112 = vmatmul.f32.gmra.mxu0 %v73
    %v113 = vpop.f32.mrf.mxu0
    %v114 = vadd.f32 %v70, %v113
    %115 = vmatmul.f32.gmra.mxu0 %v76
    %v116 = vpop.f32.mrf.mxu0
    %v117 = vadd.f32 %v70, %v116
    %118 = vmatmul.f32.gmra.mxu0 %v79
    %v119 = vpop.f32.mrf.mxu0
    %v120 = vadd.f32 %v70, %v119
    %121 = vmatmul.f32.gmra.mxu0 %v82
    %v122 = vpop.f32.mrf.mxu0
    %v123 = vadd.f32 %v70, %v122
    %124 = vmatmul.f32.gmra.mxu0 %v85
    %v125 = vpop.f32.mrf.mxu0
    %v126 = vadd.f32 %v70, %v125
    %127 = vmatmul.f32.gmra.mxu0 %v88
    %v128 = vpop.f32.mrf.mxu0
    %v129 = vadd.f32 %v70, %v128
    %130 = vmatmul.f32.gmra.mxu0 %v91
    %v131 = vpop.f32.mrf.mxu0
    %v132 = vadd.f32 %v70, %v131
    %133 = vmatmul.f32.gmra.mxu0 %v94
    %v134 = vpop.f32.mrf.mxu0
    %v135 = vadd.f32 %v70, %v134
    %136 = vdwg.mxu0
    %v137 = vld [vmem:[#allocation2] sm:$0xff]
    %v138 = vld [vmem:[#allocation2 + $0x8] sm:$0xff]
    %v139 = vld [vmem:[#allocation2 + $0x10] sm:$0xff]
    %v140 = vld [vmem:[#allocation2 + $0x18] sm:$0xff]
    %v141 = vld [vmem:[#allocation2 + $0x20] sm:$0xff]
    %v142 = vld [vmem:[#allocation2 + $0x28] sm:$0xff]
    %v143 = vld [vmem:[#allocation2 + $0x30] sm:$0xff]
    %v144 = vld [vmem:[#allocation2 + $0x38] sm:$0xff]
    %v145 = vld [vmem:[#allocation2 + $0x40] sm:$0xff]
    %v146 = vld [vmem:[#allocation2 + $0x48] sm:$0xff]
    %v147 = vld [vmem:[#allocation2 + $0x50] sm:$0xff]
    %v148 = vld [vmem:[#allocation2 + $0x58] sm:$0xff]
    %v149 = vld [vmem:[#allocation2 + $0x60] sm:$0xff]
    %v150 = vld [vmem:[#allocation2 + $0x68] sm:$0xff]
    %v151 = vld [vmem:[#allocation2 + $0x70] sm:$0xff]
    %v152 = vld [vmem:[#allocation2 + $0x78] sm:$0xff]
    %153 = vmatpush.msra.mxu0 %v152
    %154 = vmatpush.msra.mxu0 %v151
    %155 = vmatpush.msra.mxu0 %v150
    %156 = vmatpush.msra.mxu0 %v149
    %157 = vmatpush.msra.mxu0 %v148
    %158 = vmatpush.msra.mxu0 %v147
    %159 = vmatpush.msra.mxu0 %v146
    %160 = vmatpush.msra.mxu0 %v145
    %161 = vmatpush.msra.mxu0 %v144
    %162 = vmatpush.msra.mxu0 %v143
    %163 = vmatpush.msra.mxu0 %v142
    %164 = vmatpush.msra.mxu0 %v141
    %165 = vmatpush.msra.mxu0 %v140
    %166 = vmatpush.msra.mxu0 %v139
    %167 = vmatpush.msra.mxu0 %v138
    %168 = vmatpush.msra.mxu0 %v137
    %169 = vmatmul.f32.gmra.mxu0 %v59
    %v170 = vpop.f32.mrf.mxu0
    %v171 = vadd.f32 0.0, %v170
    %172 = vmatmul.f32.gmra.mxu0 %v60
    %v173 = vpop.f32.mrf.mxu0
    %v174 = vadd.f32 0.0, %v173
    %175 = vmatmul.f32.gmra.mxu0 %v61
    %v176 = vpop.f32.mrf.mxu0
    %v177 = vadd.f32 0.0, %v176
    %178 = vmatmul.f32.gmra.mxu0 %v62
    %v179 = vpop.f32.mrf.mxu0
    %v180 = vadd.f32 0.0, %v179
    %181 = vmatmul.f32.gmra.mxu0 %v63
    %v182 = vpop.f32.mrf.mxu0
    %v183 = vadd.f32 0.0, %v182
    %184 = vmatmul.f32.gmra.mxu0 %v64
    %v185 = vpop.f32.mrf.mxu0
    %v186 = vadd.f32 0.0, %v185
    %187 = vmatmul.f32.gmra.mxu0 %v65
    %v188 = vpop.f32.mrf.mxu0
    %v189 = vadd.f32 0.0, %v188
    %190 = vmatmul.f32.gmra.mxu0 %v66
    %v191 = vpop.f32.mrf.mxu0
    %v192 = vadd.f32 0.0, %v191
    %193 = vdwg.mxu0
    %v194 = vperm.slane %v67, 2
    %v195 = vmul.f32 %v194, %v59
    %v196 = vmul.f32 %v194, %v60
    %v197 = vmul.f32 %v194, %v61
    %v198 = vmul.f32 %v194, %v62
    %v199 = vmul.f32 %v194, %v63
    %v200 = vmul.f32 %v194, %v64
    %v201 = vmul.f32 %v194, %v65
    %v202 = vmul.f32 %v194, %v66
    %v203 = vadd.f32 %v195, %v114
    %v204 = vadd.f32 %v196, %v117
    %v205 = vadd.f32 %v197, %v120
    %v206 = vadd.f32 %v198, %v123
    %v207 = vadd.f32 %v199, %v126
    %v208 = vadd.f32 %v200, %v129
    %v209 = vadd.f32 %v201, %v132
    %v210 = vadd.f32 %v202, %v135
    %v211 = vand.u32 2147483647, %v203
    %vm212 = vcmp.le.f32.partialorder %v211, 0.7853982
    %vm213 = vcmp.lt.s32.totalorder %v203, 0
    %v214 = vand.u32 %v203, 2139095040
    %v215 = vshrl.u32 %v214, 23
    %v216 = vsub.s32 %v215, 127
    %v217 = vand.u32 2147483647, %v203
    %v218 = vand.u32 %v217, 8388607
    %v219 = vor.u32 %v218, 8388608
    %v220 = vsub.s32 0, %v219
    %v221 = vadd.s32 %v216, 1
    %vm222 = vcmp.gt.s32.totalorder %v221, 0
    %v223 = vsel %vm222, %v221, 0
    %v224 = vshrl.u32 %v223, 5
    %v225 = vand.u32 %v223, 31
    %v226 = vsub.s32 32, %v225
    %v227 = vshrl.u32 683565275, %v226
    %v228 = vshll.u32 683565275, %v225
    %v229 = vshrl.u32 2475754826, %v226
    %v230 = vor.u32 %v228, %v229
    %v231 = vshll.u32 2475754826, %v225
    %v232 = vshrl.u32 2131351028, %v226
    %v233 = vor.u32 %v231, %v232
    %v234 = vshll.u32 2131351028, %v225
    %v235 = vshrl.u32 2102212464, %v226
    %v236 = vor.u32 %v234, %v235
    %v237 = vshll.u32 2102212464, %v225
    %v238 = vshrl.u32 920167782, %v226
    %v239 = vor.u32 %v237, %v238
    %v240 = vshll.u32 920167782, %v225
    %v241 = vshrl.u32 1326507024, %v226
    %v242 = vor.u32 %v240, %v241
    %vm243 = vcmp.lt.s32.totalorder %v224, 1
    %vm244 = vcmp.lt.s32.totalorder %v224, 2
    %vm245 = vcmp.lt.s32.totalorder %v224, 3
    %vm246 = vcmp.lt.s32.totalorder %v224, 4
    %v247 = vsel %vm243, %v227, %v230
    %v248 = vsel %vm246, %v236, 2102212464
    %v249 = vsel %vm245, %v233, %v248
    %v250 = vsel %vm244, %v247, %v249
    %v251 = vsel %vm243, %v230, %v233
    %v252 = vsel %vm246, %v239, 920167782
    %v253 = vsel %vm245, %v236, %v252
    %v254 = vsel %vm244, %v251, %v253
    %v255 = vsel %vm243, %v233, %v236
    %v256 = vsel %vm246, %v242, 1326507024
    %v257 = vsel %vm245, %v239, %v256
    %v258 = vsel %vm244, %v255, %v257
    %v259 = vshll.u32 %v219, 8
    %v260 = vand.u32 %v259, 65535
    %v261 = vshrl.u32 %v259, 16
    %v262 = vand.u32 %v258, 65535
    %v263 = vshrl.u32 %v258, 16
    %v264 = vmul.u32 %v260, %v262
    %v265 = vmul.u32 %v260, %v263
    %v266 = vmul.u32 %v261, %v262
    %v267 = vmul.u32 %v261, %v263
    %v268 = vshll.u32 %v265, 16
    %v269 = vshrl.u32 %v265, 16
    %v270 = vshll.u32 %v266, 16
    %v271 = vshrl.u32 %v266, 16
    %vm272 = vc.u32 %v264, %v268
    %v273 = vsel %vm272, 1, 0
    %v274 = vadd.s32 %v264, %v268
    %v275 = vadd.s32 %v267, %v273
    %vm276 = vc.u32 %v274, %v270
    %v277 = vsel %vm276, 1, 0
    %v278 = vadd.s32 %v274, %v270
    %v279 = vadd.s32 %v275, %v277
    %v280 = vadd.s32 %v279, %v269
    %v281 = vadd.s32 %v280, %v271
    %v282 = vand.u32 %v259, 65535
    %v283 = vshrl.u32 %v259, 16
    %v284 = vand.u32 %v254, 65535
    %v285 = vshrl.u32 %v254, 16
    %v286 = vmul.u32 %v282, %v284
    %v287 = vmul.u32 %v282, %v285
    %v288 = vmul.u32 %v283, %v284
    %v289 = vmul.u32 %v283, %v285
    %v290 = vshll.u32 %v287, 16
    %v291 = vshrl.u32 %v287, 16
    %v292 = vshll.u32 %v288, 16
    %v293 = vshrl.u32 %v288, 16
    %vm294 = vc.u32 %v286, %v290
    %v295 = vsel %vm294, 1, 0
    %v296 = vadd.s32 %v286, %v290
    %v297 = vadd.s32 %v289, %v295
    %vm298 = vc.u32 %v296, %v292
    %v299 = vsel %vm298, 1, 0
    %v300 = vadd.s32 %v296, %v292
    %v301 = vadd.s32 %v297, %v299
    %v302 = vadd.s32 %v301, %v291
    %v303 = vadd.s32 %v302, %v293
    %v304 = vmul.u32 %v259, %v250
    %v305 = vadd.s32 %v281, %v300
    %vm306 = vc.u32 %v281, %v300
    %v307 = vadd.s32 %v303, 1
    %v308 = vsel %vm306, %v307, %v303
    %v309 = vadd.s32 %v304, %v308
    %v310 = vadd.s32 %v309, 536870912
    %v311 = vshrl.u32 %v310, 30
    %v312 = vshll.u32 %v311, 30
    %v313 = vsub.s32 %v309, %v312
    %vm314 = vcmp.lt.s32.totalorder %v313, 0
    %v315 = vsub.s32 0, %v313
    %v316 = vsel %vm314, %v315, %v313
    %v317 = vclz %v316
    %v318 = vsub.s32 %v317, 2
    %vm319 = vcmp.gt.s32.totalorder 0, %v318
    %v320 = vsel %vm319, 0, %v318
    %v321 = vsub.s32 32, %v320
    %v322 = vshll.u32 %v313, %v320
    %v323 = vshrl.u32 %v305, %v321
    %v324 = vor.u32 %v322, %v323
    %v325 = vsub.s32 4294967266, %v320
    %v326 = vadd.s32 %v325, 127
    %v327 = vshll.u32 %v326, 23
    %v328 = vor.u32 4788187, %v327
    %v329 = vand.u32 2147483647, %v328
    %v331 = vcvt.s32.f32 %v324
    %v332 = vmul.f32 %v331, %v329
    %v333 = vxor.u32 %v332, 2147483648
    %v334 = vsel %vm213, %v333, %v332
    %v335 = vsub.s32 4, %v311
    %v336 = vsel %vm213, %v335, %v311
    %v337 = vsel %vm212, %v203, %v334
    %v338 = vsel %vm212, 0, %v336
    %v339 = vmul.f32 %v337, %v337
    %v340 = vmul.f32 %v339, -0.001358992
    %v341 = vadd.f32 %v340, 0.041655596
    %v342 = vmul.f32 %v339, %v341
    %v343 = vadd.f32 %v342, -0.4999988
    %v344 = vmul.f32 %v339, %v343
    %v345 = vadd.f32 1.0, %v344
    %v346 = vmul.f32 %v337, %v337
    %v347 = vmul.f32 %v346, -0.00019511016
    %v348 = vadd.f32 %v347, 0.008332121
    %v349 = vmul.f32 %v346, %v348
    %v350 = vadd.f32 %v349, -0.16666654
    %v351 = vmul.f32 %v346, %v350
    %v352 = vadd.f32 %v351, 1.0
    %v353 = vmul.f32 %v352, %v337
    %vm354 = vweird.f32 %v203
    %v355 = vand.u32 %v338, 3
    %vm356 = vcmp.lt.s32.totalorder %v355, 2
    %vm357 = vcmp.eq.s32.totalorder %v355, 0
    %v358 = vxor.u32 %v353, 2147483648
    %v359 = vsel %vm357, %v345, %v358
    %vm360 = vcmp.eq.s32.totalorder %v355, 2
    %v361 = vxor.u32 %v345, 2147483648
    %v362 = vsel %vm360, %v361, %v353
    %v363 = vsel %vm356, %v359, %v362
    %v364 = vsel %vm354, nan, %v363
    %v365 = vand.u32 2147483647, %v204
    %vm366 = vcmp.le.f32.partialorder %v365, 0.7853982
    %vm367 = vcmp.lt.s32.totalorder %v204, 0
    %v368 = vand.u32 %v204, 2139095040
    %v369 = vshrl.u32 %v368, 23
    %v370 = vsub.s32 %v369, 127
    %v371 = vand.u32 2147483647, %v204
    %v372 = vand.u32 %v371, 8388607
    %v373 = vor.u32 %v372, 8388608
    %v374 = vsub.s32 0, %v373
    %v375 = vadd.s32 %v370, 1
    %vm376 = vcmp.gt.s32.totalorder %v375, 0
    %v377 = vsel %vm376, %v375, 0
    %v378 = vshrl.u32 %v377, 5
    %v379 = vand.u32 %v377, 31
    %v380 = vsub.s32 32, %v379
    %v381 = vshrl.u32 683565275, %v380
    %v382 = vshll.u32 683565275, %v379
    %v383 = vshrl.u32 2475754826, %v380
    %v384 = vor.u32 %v382, %v383
    %v385 = vshll.u32 2475754826, %v379
    %v386 = vshrl.u32 2131351028, %v380
    %v387 = vor.u32 %v385, %v386
    %v388 = vshll.u32 2131351028, %v379
    %v389 = vshrl.u32 2102212464, %v380
    %v390 = vor.u32 %v388, %v389
    %v391 = vshll.u32 2102212464, %v379
    %v392 = vshrl.u32 920167782, %v380
    %v393 = vor.u32 %v391, %v392
    %v394 = vshll.u32 920167782, %v379
    %v395 = vshrl.u32 1326507024, %v380
    %v396 = vor.u32 %v394, %v395
    %vm397 = vcmp.lt.s32.totalorder %v378, 1
    %vm398 = vcmp.lt.s32.totalorder %v378, 2
    %vm399 = vcmp.lt.s32.totalorder %v378, 3
    %vm400 = vcmp.lt.s32.totalorder %v378, 4
    %v401 = vsel %vm397, %v381, %v384
    %v402 = vsel %vm400, %v390, 2102212464
    %v403 = vsel %vm399, %v387, %v402
    %v404 = vsel %vm398, %v401, %v403
    %v405 = vsel %vm397, %v384, %v387
    %v406 = vsel %vm400, %v393, 920167782
    %v407 = vsel %vm399, %v390, %v406
    %v408 = vsel %vm398, %v405, %v407
    %v409 = vsel %vm397, %v387, %v390
    %v410 = vsel %vm400, %v396, 1326507024
    %v411 = vsel %vm399, %v393, %v410
    %v412 = vsel %vm398, %v409, %v411
    %v413 = vshll.u32 %v373, 8
    %v414 = vand.u32 %v413, 65535
    %v415 = vshrl.u32 %v413, 16
    %v416 = vand.u32 %v412, 65535
    %v417 = vshrl.u32 %v412, 16
    %v418 = vmul.u32 %v414, %v416
    %v419 = vmul.u32 %v414, %v417
    %v420 = vmul.u32 %v415, %v416
    %v421 = vmul.u32 %v415, %v417
    %v422 = vshll.u32 %v419, 16
    %v423 = vshrl.u32 %v419, 16
    %v424 = vshll.u32 %v420, 16
    %v425 = vshrl.u32 %v420, 16
    %vm426 = vc.u32 %v418, %v422
    %v427 = vsel %vm426, 1, 0
    %v428 = vadd.s32 %v418, %v422
    %v429 = vadd.s32 %v421, %v427
    %vm430 = vc.u32 %v428, %v424
    %v431 = vsel %vm430, 1, 0
    %v432 = vadd.s32 %v428, %v424
    %v433 = vadd.s32 %v429, %v431
    %v434 = vadd.s32 %v433, %v423
    %v435 = vadd.s32 %v434, %v425
    %v436 = vand.u32 %v413, 65535
    %v437 = vshrl.u32 %v413, 16
    %v438 = vand.u32 %v408, 65535
    %v439 = vshrl.u32 %v408, 16
    %v440 = vmul.u32 %v436, %v438
    %v441 = vmul.u32 %v436, %v439
    %v442 = vmul.u32 %v437, %v438
    %v443 = vmul.u32 %v437, %v439
    %v444 = vshll.u32 %v441, 16
    %v445 = vshrl.u32 %v441, 16
    %v446 = vshll.u32 %v442, 16
    %v447 = vshrl.u32 %v442, 16
    %vm448 = vc.u32 %v440, %v444
    %v449 = vsel %vm448, 1, 0
    %v450 = vadd.s32 %v440, %v444
    %v451 = vadd.s32 %v443, %v449
    %vm452 = vc.u32 %v450, %v446
    %v453 = vsel %vm452, 1, 0
    %v454 = vadd.s32 %v450, %v446
    %v455 = vadd.s32 %v451, %v453
    %v456 = vadd.s32 %v455, %v445
    %v457 = vadd.s32 %v456, %v447
    %v458 = vmul.u32 %v413, %v404
    %v459 = vadd.s32 %v435, %v454
    %vm460 = vc.u32 %v435, %v454
    %v461 = vadd.s32 %v457, 1
    %v462 = vsel %vm460, %v461, %v457
    %v463 = vadd.s32 %v458, %v462
    %v464 = vadd.s32 %v463, 536870912
    %v465 = vshrl.u32 %v464, 30
    %v466 = vshll.u32 %v465, 30
    %v467 = vsub.s32 %v463, %v466
    %vm468 = vcmp.lt.s32.totalorder %v467, 0
    %v469 = vsub.s32 0, %v467
    %v470 = vsel %vm468, %v469, %v467
    %v471 = vclz %v470
    %v472 = vsub.s32 %v471, 2
    %vm473 = vcmp.gt.s32.totalorder 0, %v472
    %v474 = vsel %vm473, 0, %v472
    %v475 = vsub.s32 32, %v474
    %v476 = vshll.u32 %v467, %v474
    %v477 = vshrl.u32 %v459, %v475
    %v478 = vor.u32 %v476, %v477
    %v479 = vsub.s32 4294967266, %v474
    %v480 = vadd.s32 %v479, 127
    %v481 = vshll.u32 %v480, 23
    %v482 = vor.u32 4788187, %v481
    %v483 = vand.u32 2147483647, %v482
    %v485 = vcvt.s32.f32 %v478
    %v486 = vmul.f32 %v485, %v483
    %v487 = vxor.u32 %v486, 2147483648
    %v488 = vsel %vm367, %v487, %v486
    %v489 = vsub.s32 4, %v465
    %v490 = vsel %vm367, %v489, %v465
    %v491 = vsel %vm366, %v204, %v488
    %v492 = vsel %vm366, 0, %v490
    %v493 = vmul.f32 %v491, %v491
    %v494 = vmul.f32 %v493, -0.001358992
    %v495 = vadd.f32 %v494, 0.041655596
    %v496 = vmul.f32 %v493, %v495
    %v497 = vadd.f32 %v496, -0.4999988
    %v498 = vmul.f32 %v493, %v497
    %v499 = vadd.f32 1.0, %v498
    %v500 = vmul.f32 %v491, %v491
    %v501 = vmul.f32 %v500, -0.00019511016
    %v502 = vadd.f32 %v501, 0.008332121
    %v503 = vmul.f32 %v500, %v502
    %v504 = vadd.f32 %v503, -0.16666654
    %v505 = vmul.f32 %v500, %v504
    %v506 = vadd.f32 %v505, 1.0
    %v507 = vmul.f32 %v506, %v491
    %vm508 = vweird.f32 %v204
    %v509 = vand.u32 %v492, 3
    %vm510 = vcmp.lt.s32.totalorder %v509, 2
    %vm511 = vcmp.eq.s32.totalorder %v509, 0
    %v512 = vxor.u32 %v507, 2147483648
    %v513 = vsel %vm511, %v499, %v512
    %vm514 = vcmp.eq.s32.totalorder %v509, 2
    %v515 = vxor.u32 %v499, 2147483648
    %v516 = vsel %vm514, %v515, %v507
    %v517 = vsel %vm510, %v513, %v516
    %v518 = vsel %vm508, nan, %v517
    %v519 = vand.u32 2147483647, %v205
    %vm520 = vcmp.le.f32.partialorder %v519, 0.7853982
    %vm521 = vcmp.lt.s32.totalorder %v205, 0
    %v522 = vand.u32 %v205, 2139095040
    %v523 = vshrl.u32 %v522, 23
    %v524 = vsub.s32 %v523, 127
    %v525 = vand.u32 2147483647, %v205
    %v526 = vand.u32 %v525, 8388607
    %v527 = vor.u32 %v526, 8388608
    %v528 = vsub.s32 0, %v527
    %v529 = vadd.s32 %v524, 1
    %vm530 = vcmp.gt.s32.totalorder %v529, 0
    %v531 = vsel %vm530, %v529, 0
    %v532 = vshrl.u32 %v531, 5
    %v533 = vand.u32 %v531, 31
    %v534 = vsub.s32 32, %v533
    %v535 = vshrl.u32 683565275, %v534
    %v536 = vshll.u32 683565275, %v533
    %v537 = vshrl.u32 2475754826, %v534
    %v538 = vor.u32 %v536, %v537
    %v539 = vshll.u32 2475754826, %v533
    %v540 = vshrl.u32 2131351028, %v534
    %v541 = vor.u32 %v539, %v540
    %v542 = vshll.u32 2131351028, %v533
    %v543 = vshrl.u32 2102212464, %v534
    %v544 = vor.u32 %v542, %v543
    %v545 = vshll.u32 2102212464, %v533
    %v546 = vshrl.u32 920167782, %v534
    %v547 = vor.u32 %v545, %v546
    %v548 = vshll.u32 920167782, %v533
    %v549 = vshrl.u32 1326507024, %v534
    %v550 = vor.u32 %v548, %v549
    %vm551 = vcmp.lt.s32.totalorder %v532, 1
    %vm552 = vcmp.lt.s32.totalorder %v532, 2
    %vm553 = vcmp.lt.s32.totalorder %v532, 3
    %vm554 = vcmp.lt.s32.totalorder %v532, 4
    %v555 = vsel %vm551, %v535, %v538
    %v556 = vsel %vm554, %v544, 2102212464
    %v557 = vsel %vm553, %v541, %v556
    %v558 = vsel %vm552, %v555, %v557
    %v559 = vsel %vm551, %v538, %v541
    %v560 = vsel %vm554, %v547, 920167782
    %v561 = vsel %vm553, %v544, %v560
    %v562 = vsel %vm552, %v559, %v561
    %v563 = vsel %vm551, %v541, %v544
    %v564 = vsel %vm554, %v550, 1326507024
    %v565 = vsel %vm553, %v547, %v564
    %v566 = vsel %vm552, %v563, %v565
    %v567 = vshll.u32 %v527, 8
    %v568 = vand.u32 %v567, 65535
    %v569 = vshrl.u32 %v567, 16
    %v570 = vand.u32 %v566, 65535
    %v571 = vshrl.u32 %v566, 16
    %v572 = vmul.u32 %v568, %v570
    %v573 = vmul.u32 %v568, %v571
    %v574 = vmul.u32 %v569, %v570
    %v575 = vmul.u32 %v569, %v571
    %v576 = vshll.u32 %v573, 16
    %v577 = vshrl.u32 %v573, 16
    %v578 = vshll.u32 %v574, 16
    %v579 = vshrl.u32 %v574, 16
    %vm580 = vc.u32 %v572, %v576
    %v581 = vsel %vm580, 1, 0
    %v582 = vadd.s32 %v572, %v576
    %v583 = vadd.s32 %v575, %v581
    %vm584 = vc.u32 %v582, %v578
    %v585 = vsel %vm584, 1, 0
    %v586 = vadd.s32 %v582, %v578
    %v587 = vadd.s32 %v583, %v585
    %v588 = vadd.s32 %v587, %v577
    %v589 = vadd.s32 %v588, %v579
    %v590 = vand.u32 %v567, 65535
    %v591 = vshrl.u32 %v567, 16
    %v592 = vand.u32 %v562, 65535
    %v593 = vshrl.u32 %v562, 16
    %v594 = vmul.u32 %v590, %v592
    %v595 = vmul.u32 %v590, %v593
    %v596 = vmul.u32 %v591, %v592
    %v597 = vmul.u32 %v591, %v593
    %v598 = vshll.u32 %v595, 16
    %v599 = vshrl.u32 %v595, 16
    %v600 = vshll.u32 %v596, 16
    %v601 = vshrl.u32 %v596, 16
    %vm602 = vc.u32 %v594, %v598
    %v603 = vsel %vm602, 1, 0
    %v604 = vadd.s32 %v594, %v598
    %v605 = vadd.s32 %v597, %v603
    %vm606 = vc.u32 %v604, %v600
    %v607 = vsel %vm606, 1, 0
    %v608 = vadd.s32 %v604, %v600
    %v609 = vadd.s32 %v605, %v607
    %v610 = vadd.s32 %v609, %v599
    %v611 = vadd.s32 %v610, %v601
    %v612 = vmul.u32 %v567, %v558
    %v613 = vadd.s32 %v589, %v608
    %vm614 = vc.u32 %v589, %v608
    %v615 = vadd.s32 %v611, 1
    %v616 = vsel %vm614, %v615, %v611
    %v617 = vadd.s32 %v612, %v616
    %v618 = vadd.s32 %v617, 536870912
    %v619 = vshrl.u32 %v618, 30
    %v620 = vshll.u32 %v619, 30
    %v621 = vsub.s32 %v617, %v620
    %vm622 = vcmp.lt.s32.totalorder %v621, 0
    %v623 = vsub.s32 0, %v621
    %v624 = vsel %vm622, %v623, %v621
    %v625 = vclz %v624
    %v626 = vsub.s32 %v625, 2
    %vm627 = vcmp.gt.s32.totalorder 0, %v626
    %v628 = vsel %vm627, 0, %v626
    %v629 = vsub.s32 32, %v628
    %v630 = vshll.u32 %v621, %v628
    %v631 = vshrl.u32 %v613, %v629
    %v632 = vor.u32 %v630, %v631
    %v633 = vsub.s32 4294967266, %v628
    %v634 = vadd.s32 %v633, 127
    %v635 = vshll.u32 %v634, 23
    %v636 = vor.u32 4788187, %v635
    %v637 = vand.u32 2147483647, %v636
    %v639 = vcvt.s32.f32 %v632
    %v640 = vmul.f32 %v639, %v637
    %v641 = vxor.u32 %v640, 2147483648
    %v642 = vsel %vm521, %v641, %v640
    %v643 = vsub.s32 4, %v619
    %v644 = vsel %vm521, %v643, %v619
    %v645 = vsel %vm520, %v205, %v642
    %v646 = vsel %vm520, 0, %v644
    %v647 = vmul.f32 %v645, %v645
    %v648 = vmul.f32 %v647, -0.001358992
    %v649 = vadd.f32 %v648, 0.041655596
    %v650 = vmul.f32 %v647, %v649
    %v651 = vadd.f32 %v650, -0.4999988
    %v652 = vmul.f32 %v647, %v651
    %v653 = vadd.f32 1.0, %v652
    %v654 = vmul.f32 %v645, %v645
    %v655 = vmul.f32 %v654, -0.00019511016
    %v656 = vadd.f32 %v655, 0.008332121
    %v657 = vmul.f32 %v654, %v656
    %v658 = vadd.f32 %v657, -0.16666654
    %v659 = vmul.f32 %v654, %v658
    %v660 = vadd.f32 %v659, 1.0
    %v661 = vmul.f32 %v660, %v645
    %vm662 = vweird.f32 %v205
    %v663 = vand.u32 %v646, 3
    %vm664 = vcmp.lt.s32.totalorder %v663, 2
    %vm665 = vcmp.eq.s32.totalorder %v663, 0
    %v666 = vxor.u32 %v661, 2147483648
    %v667 = vsel %vm665, %v653, %v666
    %vm668 = vcmp.eq.s32.totalorder %v663, 2
    %v669 = vxor.u32 %v653, 2147483648
    %v670 = vsel %vm668, %v669, %v661
    %v671 = vsel %vm664, %v667, %v670
    %v672 = vsel %vm662, nan, %v671
    %v673 = vand.u32 2147483647, %v206
    %vm674 = vcmp.le.f32.partialorder %v673, 0.7853982
    %vm675 = vcmp.lt.s32.totalorder %v206, 0
    %v676 = vand.u32 %v206, 2139095040
    %v677 = vshrl.u32 %v676, 23
    %v678 = vsub.s32 %v677, 127
    %v679 = vand.u32 2147483647, %v206
    %v680 = vand.u32 %v679, 8388607
    %v681 = vor.u32 %v680, 8388608
    %v682 = vsub.s32 0, %v681
    %v683 = vadd.s32 %v678, 1
    %vm684 = vcmp.gt.s32.totalorder %v683, 0
    %v685 = vsel %vm684, %v683, 0
    %v686 = vshrl.u32 %v685, 5
    %v687 = vand.u32 %v685, 31
    %v688 = vsub.s32 32, %v687
    %v689 = vshrl.u32 683565275, %v688
    %v690 = vshll.u32 683565275, %v687
    %v691 = vshrl.u32 2475754826, %v688
    %v692 = vor.u32 %v690, %v691
    %v693 = vshll.u32 2475754826, %v687
    %v694 = vshrl.u32 2131351028, %v688
    %v695 = vor.u32 %v693, %v694
    %v696 = vshll.u32 2131351028, %v687
    %v697 = vshrl.u32 2102212464, %v688
    %v698 = vor.u32 %v696, %v697
    %v699 = vshll.u32 2102212464, %v687
    %v700 = vshrl.u32 920167782, %v688
    %v701 = vor.u32 %v699, %v700
    %v702 = vshll.u32 920167782, %v687
    %v703 = vshrl.u32 1326507024, %v688
    %v704 = vor.u32 %v702, %v703
    %vm705 = vcmp.lt.s32.totalorder %v686, 1
    %vm706 = vcmp.lt.s32.totalorder %v686, 2
    %vm707 = vcmp.lt.s32.totalorder %v686, 3
    %vm708 = vcmp.lt.s32.totalorder %v686, 4
    %v709 = vsel %vm705, %v689, %v692
    %v710 = vsel %vm708, %v698, 2102212464
    %v711 = vsel %vm707, %v695, %v710
    %v712 = vsel %vm706, %v709, %v711
    %v713 = vsel %vm705, %v692, %v695
    %v714 = vsel %vm708, %v701, 920167782
    %v715 = vsel %vm707, %v698, %v714
    %v716 = vsel %vm706, %v713, %v715
    %v717 = vsel %vm705, %v695, %v698
    %v718 = vsel %vm708, %v704, 1326507024
    %v719 = vsel %vm707, %v701, %v718
    %v720 = vsel %vm706, %v717, %v719
    %v721 = vshll.u32 %v681, 8
    %v722 = vand.u32 %v721, 65535
    %v723 = vshrl.u32 %v721, 16
    %v724 = vand.u32 %v720, 65535
    %v725 = vshrl.u32 %v720, 16
    %v726 = vmul.u32 %v722, %v724
    %v727 = vmul.u32 %v722, %v725
    %v728 = vmul.u32 %v723, %v724
    %v729 = vmul.u32 %v723, %v725
    %v730 = vshll.u32 %v727, 16
    %v731 = vshrl.u32 %v727, 16
    %v732 = vshll.u32 %v728, 16
    %v733 = vshrl.u32 %v728, 16
    %vm734 = vc.u32 %v726, %v730
    %v735 = vsel %vm734, 1, 0
    %v736 = vadd.s32 %v726, %v730
    %v737 = vadd.s32 %v729, %v735
    %vm738 = vc.u32 %v736, %v732
    %v739 = vsel %vm738, 1, 0
    %v740 = vadd.s32 %v736, %v732
    %v741 = vadd.s32 %v737, %v739
    %v742 = vadd.s32 %v741, %v731
    %v743 = vadd.s32 %v742, %v733
    %v744 = vand.u32 %v721, 65535
    %v745 = vshrl.u32 %v721, 16
    %v746 = vand.u32 %v716, 65535
    %v747 = vshrl.u32 %v716, 16
    %v748 = vmul.u32 %v744, %v746
    %v749 = vmul.u32 %v744, %v747
    %v750 = vmul.u32 %v745, %v746
    %v751 = vmul.u32 %v745, %v747
    %v752 = vshll.u32 %v749, 16
    %v753 = vshrl.u32 %v749, 16
    %v754 = vshll.u32 %v750, 16
    %v755 = vshrl.u32 %v750, 16
    %vm756 = vc.u32 %v748, %v752
    %v757 = vsel %vm756, 1, 0
    %v758 = vadd.s32 %v748, %v752
    %v759 = vadd.s32 %v751, %v757
    %vm760 = vc.u32 %v758, %v754
    %v761 = vsel %vm760, 1, 0
    %v762 = vadd.s32 %v758, %v754
    %v763 = vadd.s32 %v759, %v761
    %v764 = vadd.s32 %v763, %v753
    %v765 = vadd.s32 %v764, %v755
    %v766 = vmul.u32 %v721, %v712
    %v767 = vadd.s32 %v743, %v762
    %vm768 = vc.u32 %v743, %v762
    %v769 = vadd.s32 %v765, 1
    %v770 = vsel %vm768, %v769, %v765
    %v771 = vadd.s32 %v766, %v770
    %v772 = vadd.s32 %v771, 536870912
    %v773 = vshrl.u32 %v772, 30
    %v774 = vshll.u32 %v773, 30
    %v775 = vsub.s32 %v771, %v774
    %vm776 = vcmp.lt.s32.totalorder %v775, 0
    %v777 = vsub.s32 0, %v775
    %v778 = vsel %vm776, %v777, %v775
    %v779 = vclz %v778
    %v780 = vsub.s32 %v779, 2
    %vm781 = vcmp.gt.s32.totalorder 0, %v780
    %v782 = vsel %vm781, 0, %v780
    %v783 = vsub.s32 32, %v782
    %v784 = vshll.u32 %v775, %v782
    %v785 = vshrl.u32 %v767, %v783
    %v786 = vor.u32 %v784, %v785
    %v787 = vsub.s32 4294967266, %v782
    %v788 = vadd.s32 %v787, 127
    %v789 = vshll.u32 %v788, 23
    %v790 = vor.u32 4788187, %v789
    %v791 = vand.u32 2147483647, %v790
    %v793 = vcvt.s32.f32 %v786
    %v794 = vmul.f32 %v793, %v791
    %v795 = vxor.u32 %v794, 2147483648
    %v796 = vsel %vm675, %v795, %v794
    %v797 = vsub.s32 4, %v773
    %v798 = vsel %vm675, %v797, %v773
    %v799 = vsel %vm674, %v206, %v796
    %v800 = vsel %vm674, 0, %v798
    %v801 = vmul.f32 %v799, %v799
    %v802 = vmul.f32 %v801, -0.001358992
    %v803 = vadd.f32 %v802, 0.041655596
    %v804 = vmul.f32 %v801, %v803
    %v805 = vadd.f32 %v804, -0.4999988
    %v806 = vmul.f32 %v801, %v805
    %v807 = vadd.f32 1.0, %v806
    %v808 = vmul.f32 %v799, %v799
    %v809 = vmul.f32 %v808, -0.00019511016
    %v810 = vadd.f32 %v809, 0.008332121
    %v811 = vmul.f32 %v808, %v810
    %v812 = vadd.f32 %v811, -0.16666654
    %v813 = vmul.f32 %v808, %v812
    %v814 = vadd.f32 %v813, 1.0
    %v815 = vmul.f32 %v814, %v799
    %vm816 = vweird.f32 %v206
    %v817 = vand.u32 %v800, 3
    %vm818 = vcmp.lt.s32.totalorder %v817, 2
    %vm819 = vcmp.eq.s32.totalorder %v817, 0
    %v820 = vxor.u32 %v815, 2147483648
    %v821 = vsel %vm819, %v807, %v820
    %vm822 = vcmp.eq.s32.totalorder %v817, 2
    %v823 = vxor.u32 %v807, 2147483648
    %v824 = vsel %vm822, %v823, %v815
    %v825 = vsel %vm818, %v821, %v824
    %v826 = vsel %vm816, nan, %v825
    %v827 = vand.u32 2147483647, %v207
    %vm828 = vcmp.le.f32.partialorder %v827, 0.7853982
    %vm829 = vcmp.lt.s32.totalorder %v207, 0
    %v830 = vand.u32 %v207, 2139095040
    %v831 = vshrl.u32 %v830, 23
    %v832 = vsub.s32 %v831, 127
    %v833 = vand.u32 2147483647, %v207
    %v834 = vand.u32 %v833, 8388607
    %v835 = vor.u32 %v834, 8388608
    %v836 = vsub.s32 0, %v835
    %v837 = vadd.s32 %v832, 1
    %vm838 = vcmp.gt.s32.totalorder %v837, 0
    %v839 = vsel %vm838, %v837, 0
    %v840 = vshrl.u32 %v839, 5
    %v841 = vand.u32 %v839, 31
    %v842 = vsub.s32 32, %v841
    %v843 = vshrl.u32 683565275, %v842
    %v844 = vshll.u32 683565275, %v841
    %v845 = vshrl.u32 2475754826, %v842
    %v846 = vor.u32 %v844, %v845
    %v847 = vshll.u32 2475754826, %v841
    %v848 = vshrl.u32 2131351028, %v842
    %v849 = vor.u32 %v847, %v848
    %v850 = vshll.u32 2131351028, %v841
    %v851 = vshrl.u32 2102212464, %v842
    %v852 = vor.u32 %v850, %v851
    %v853 = vshll.u32 2102212464, %v841
    %v854 = vshrl.u32 920167782, %v842
    %v855 = vor.u32 %v853, %v854
    %v856 = vshll.u32 920167782, %v841
    %v857 = vshrl.u32 1326507024, %v842
    %v858 = vor.u32 %v856, %v857
    %vm859 = vcmp.lt.s32.totalorder %v840, 1
    %vm860 = vcmp.lt.s32.totalorder %v840, 2
    %vm861 = vcmp.lt.s32.totalorder %v840, 3
    %vm862 = vcmp.lt.s32.totalorder %v840, 4
    %v863 = vsel %vm859, %v843, %v846
    %v864 = vsel %vm862, %v852, 2102212464
    %v865 = vsel %vm861, %v849, %v864
    %v866 = vsel %vm860, %v863, %v865
    %v867 = vsel %vm859, %v846, %v849
    %v868 = vsel %vm862, %v855, 920167782
    %v869 = vsel %vm861, %v852, %v868
    %v870 = vsel %vm860, %v867, %v869
    %v871 = vsel %vm859, %v849, %v852
    %v872 = vsel %vm862, %v858, 1326507024
    %v873 = vsel %vm861, %v855, %v872
    %v874 = vsel %vm860, %v871, %v873
    %v875 = vshll.u32 %v835, 8
    %v876 = vand.u32 %v875, 65535
    %v877 = vshrl.u32 %v875, 16
    %v878 = vand.u32 %v874, 65535
    %v879 = vshrl.u32 %v874, 16
    %v880 = vmul.u32 %v876, %v878
    %v881 = vmul.u32 %v876, %v879
    %v882 = vmul.u32 %v877, %v878
    %v883 = vmul.u32 %v877, %v879
    %v884 = vshll.u32 %v881, 16
    %v885 = vshrl.u32 %v881, 16
    %v886 = vshll.u32 %v882, 16
    %v887 = vshrl.u32 %v882, 16
    %vm888 = vc.u32 %v880, %v884
    %v889 = vsel %vm888, 1, 0
    %v890 = vadd.s32 %v880, %v884
    %v891 = vadd.s32 %v883, %v889
    %vm892 = vc.u32 %v890, %v886
    %v893 = vsel %vm892, 1, 0
    %v894 = vadd.s32 %v890, %v886
    %v895 = vadd.s32 %v891, %v893
    %v896 = vadd.s32 %v895, %v885
    %v897 = vadd.s32 %v896, %v887
    %v898 = vand.u32 %v875, 65535
    %v899 = vshrl.u32 %v875, 16
    %v900 = vand.u32 %v870, 65535
    %v901 = vshrl.u32 %v870, 16
    %v902 = vmul.u32 %v898, %v900
    %v903 = vmul.u32 %v898, %v901
    %v904 = vmul.u32 %v899, %v900
    %v905 = vmul.u32 %v899, %v901
    %v906 = vshll.u32 %v903, 16
    %v907 = vshrl.u32 %v903, 16
    %v908 = vshll.u32 %v904, 16
    %v909 = vshrl.u32 %v904, 16
    %vm910 = vc.u32 %v902, %v906
    %v911 = vsel %vm910, 1, 0
    %v912 = vadd.s32 %v902, %v906
    %v913 = vadd.s32 %v905, %v911
    %vm914 = vc.u32 %v912, %v908
    %v915 = vsel %vm914, 1, 0
    %v916 = vadd.s32 %v912, %v908
    %v917 = vadd.s32 %v913, %v915
    %v918 = vadd.s32 %v917, %v907
    %v919 = vadd.s32 %v918, %v909
    %v920 = vmul.u32 %v875, %v866
    %v921 = vadd.s32 %v897, %v916
    %vm922 = vc.u32 %v897, %v916
    %v923 = vadd.s32 %v919, 1
    %v924 = vsel %vm922, %v923, %v919
    %v925 = vadd.s32 %v920, %v924
    %v926 = vadd.s32 %v925, 536870912
    %v927 = vshrl.u32 %v926, 30
    %v928 = vshll.u32 %v927, 30
    %v929 = vsub.s32 %v925, %v928
    %vm930 = vcmp.lt.s32.totalorder %v929, 0
    %v931 = vsub.s32 0, %v929
    %v932 = vsel %vm930, %v931, %v929
    %v933 = vclz %v932
    %v934 = vsub.s32 %v933, 2
    %vm935 = vcmp.gt.s32.totalorder 0, %v934
    %v936 = vsel %vm935, 0, %v934
    %v937 = vsub.s32 32, %v936
    %v938 = vshll.u32 %v929, %v936
    %v939 = vshrl.u32 %v921, %v937
    %v940 = vor.u32 %v938, %v939
    %v941 = vsub.s32 4294967266, %v936
    %v942 = vadd.s32 %v941, 127
    %v943 = vshll.u32 %v942, 23
    %v944 = vor.u32 4788187, %v943
    %v945 = vand.u32 2147483647, %v944
    %v947 = vcvt.s32.f32 %v940
    %v948 = vmul.f32 %v947, %v945
    %v949 = vxor.u32 %v948, 2147483648
    %v950 = vsel %vm829, %v949, %v948
    %v951 = vsub.s32 4, %v927
    %v952 = vsel %vm829, %v951, %v927
    %v953 = vsel %vm828, %v207, %v950
    %v954 = vsel %vm828, 0, %v952
    %v955 = vmul.f32 %v953, %v953
    %v956 = vmul.f32 %v955, -0.001358992
    %v957 = vadd.f32 %v956, 0.041655596
    %v958 = vmul.f32 %v955, %v957
    %v959 = vadd.f32 %v958, -0.4999988
    %v960 = vmul.f32 %v955, %v959
    %v961 = vadd.f32 1.0, %v960
    %v962 = vmul.f32 %v953, %v953
    %v963 = vmul.f32 %v962, -0.00019511016
    %v964 = vadd.f32 %v963, 0.008332121
    %v965 = vmul.f32 %v962, %v964
    %v966 = vadd.f32 %v965, -0.16666654
    %v967 = vmul.f32 %v962, %v966
    %v968 = vadd.f32 %v967, 1.0
    %v969 = vmul.f32 %v968, %v953
    %vm970 = vweird.f32 %v207
    %v971 = vand.u32 %v954, 3
    %vm972 = vcmp.lt.s32.totalorder %v971, 2
    %vm973 = vcmp.eq.s32.totalorder %v971, 0
    %v974 = vxor.u32 %v969, 2147483648
    %v975 = vsel %vm973, %v961, %v974
    %vm976 = vcmp.eq.s32.totalorder %v971, 2
    %v977 = vxor.u32 %v961, 2147483648
    %v978 = vsel %vm976, %v977, %v969
    %v979 = vsel %vm972, %v975, %v978
    %v980 = vsel %vm970, nan, %v979
    %v981 = vand.u32 2147483647, %v208
    %vm982 = vcmp.le.f32.partialorder %v981, 0.7853982
    %vm983 = vcmp.lt.s32.totalorder %v208, 0
    %v984 = vand.u32 %v208, 2139095040
    %v985 = vshrl.u32 %v984, 23
    %v986 = vsub.s32 %v985, 127
    %v987 = vand.u32 2147483647, %v208
    %v988 = vand.u32 %v987, 8388607
    %v989 = vor.u32 %v988, 8388608
    %v990 = vsub.s32 0, %v989
    %v991 = vadd.s32 %v986, 1
    %vm992 = vcmp.gt.s32.totalorder %v991, 0
    %v993 = vsel %vm992, %v991, 0
    %v994 = vshrl.u32 %v993, 5
    %v995 = vand.u32 %v993, 31
    %v996 = vsub.s32 32, %v995
    %v997 = vshrl.u32 683565275, %v996
    %v998 = vshll.u32 683565275, %v995
    %v999 = vshrl.u32 2475754826, %v996
    %v1000 = vor.u32 %v998, %v999
    %v1001 = vshll.u32 2475754826, %v995
    %v1002 = vshrl.u32 2131351028, %v996
    %v1003 = vor.u32 %v1001, %v1002
    %v1004 = vshll.u32 2131351028, %v995
    %v1005 = vshrl.u32 2102212464, %v996
    %v1006 = vor.u32 %v1004, %v1005
    %v1007 = vshll.u32 2102212464, %v995
    %v1008 = vshrl.u32 920167782, %v996
    %v1009 = vor.u32 %v1007, %v1008
    %v1010 = vshll.u32 920167782, %v995
    %v1011 = vshrl.u32 1326507024, %v996
    %v1012 = vor.u32 %v1010, %v1011
    %vm1013 = vcmp.lt.s32.totalorder %v994, 1
    %vm1014 = vcmp.lt.s32.totalorder %v994, 2
    %vm1015 = vcmp.lt.s32.totalorder %v994, 3
    %vm1016 = vcmp.lt.s32.totalorder %v994, 4
    %v1017 = vsel %vm1013, %v997, %v1000
    %v1018 = vsel %vm1016, %v1006, 2102212464
    %v1019 = vsel %vm1015, %v1003, %v1018
    %v1020 = vsel %vm1014, %v1017, %v1019
    %v1021 = vsel %vm1013, %v1000, %v1003
    %v1022 = vsel %vm1016, %v1009, 920167782
    %v1023 = vsel %vm1015, %v1006, %v1022
    %v1024 = vsel %vm1014, %v1021, %v1023
    %v1025 = vsel %vm1013, %v1003, %v1006
    %v1026 = vsel %vm1016, %v1012, 1326507024
    %v1027 = vsel %vm1015, %v1009, %v1026
    %v1028 = vsel %vm1014, %v1025, %v1027
    %v1029 = vshll.u32 %v989, 8
    %v1030 = vand.u32 %v1029, 65535
    %v1031 = vshrl.u32 %v1029, 16
    %v1032 = vand.u32 %v1028, 65535
    %v1033 = vshrl.u32 %v1028, 16
    %v1034 = vmul.u32 %v1030, %v1032
    %v1035 = vmul.u32 %v1030, %v1033
    %v1036 = vmul.u32 %v1031, %v1032
    %v1037 = vmul.u32 %v1031, %v1033
    %v1038 = vshll.u32 %v1035, 16
    %v1039 = vshrl.u32 %v1035, 16
    %v1040 = vshll.u32 %v1036, 16
    %v1041 = vshrl.u32 %v1036, 16
    %vm1042 = vc.u32 %v1034, %v1038
    %v1043 = vsel %vm1042, 1, 0
    %v1044 = vadd.s32 %v1034, %v1038
    %v1045 = vadd.s32 %v1037, %v1043
    %vm1046 = vc.u32 %v1044, %v1040
    %v1047 = vsel %vm1046, 1, 0
    %v1048 = vadd.s32 %v1044, %v1040
    %v1049 = vadd.s32 %v1045, %v1047
    %v1050 = vadd.s32 %v1049, %v1039
    %v1051 = vadd.s32 %v1050, %v1041
    %v1052 = vand.u32 %v1029, 65535
    %v1053 = vshrl.u32 %v1029, 16
    %v1054 = vand.u32 %v1024, 65535
    %v1055 = vshrl.u32 %v1024, 16
    %v1056 = vmul.u32 %v1052, %v1054
    %v1057 = vmul.u32 %v1052, %v1055
    %v1058 = vmul.u32 %v1053, %v1054
    %v1059 = vmul.u32 %v1053, %v1055
    %v1060 = vshll.u32 %v1057, 16
    %v1061 = vshrl.u32 %v1057, 16
    %v1062 = vshll.u32 %v1058, 16
    %v1063 = vshrl.u32 %v1058, 16
    %vm1064 = vc.u32 %v1056, %v1060
    %v1065 = vsel %vm1064, 1, 0
    %v1066 = vadd.s32 %v1056, %v1060
    %v1067 = vadd.s32 %v1059, %v1065
    %vm1068 = vc.u32 %v1066, %v1062
    %v1069 = vsel %vm1068, 1, 0
    %v1070 = vadd.s32 %v1066, %v1062
    %v1071 = vadd.s32 %v1067, %v1069
    %v1072 = vadd.s32 %v1071, %v1061
    %v1073 = vadd.s32 %v1072, %v1063
    %v1074 = vmul.u32 %v1029, %v1020
    %v1075 = vadd.s32 %v1051, %v1070
    %vm1076 = vc.u32 %v1051, %v1070
    %v1077 = vadd.s32 %v1073, 1
    %v1078 = vsel %vm1076, %v1077, %v1073
    %v1079 = vadd.s32 %v1074, %v1078
    %v1080 = vadd.s32 %v1079, 536870912
    %v1081 = vshrl.u32 %v1080, 30
    %v1082 = vshll.u32 %v1081, 30
    %v1083 = vsub.s32 %v1079, %v1082
    %vm1084 = vcmp.lt.s32.totalorder %v1083, 0
    %v1085 = vsub.s32 0, %v1083
    %v1086 = vsel %vm1084, %v1085, %v1083
    %v1087 = vclz %v1086
    %v1088 = vsub.s32 %v1087, 2
    %vm1089 = vcmp.gt.s32.totalorder 0, %v1088
    %v1090 = vsel %vm1089, 0, %v1088
    %v1091 = vsub.s32 32, %v1090
    %v1092 = vshll.u32 %v1083, %v1090
    %v1093 = vshrl.u32 %v1075, %v1091
    %v1094 = vor.u32 %v1092, %v1093
    %v1095 = vsub.s32 4294967266, %v1090
    %v1096 = vadd.s32 %v1095, 127
    %v1097 = vshll.u32 %v1096, 23
    %v1098 = vor.u32 4788187, %v1097
    %v1099 = vand.u32 2147483647, %v1098
    %v1101 = vcvt.s32.f32 %v1094
    %v1102 = vmul.f32 %v1101, %v1099
    %v1103 = vxor.u32 %v1102, 2147483648
    %v1104 = vsel %vm983, %v1103, %v1102
    %v1105 = vsub.s32 4, %v1081
    %v1106 = vsel %vm983, %v1105, %v1081
    %v1107 = vsel %vm982, %v208, %v1104
    %v1108 = vsel %vm982, 0, %v1106
    %v1109 = vmul.f32 %v1107, %v1107
    %v1110 = vmul.f32 %v1109, -0.001358992
    %v1111 = vadd.f32 %v1110, 0.041655596
    %v1112 = vmul.f32 %v1109, %v1111
    %v1113 = vadd.f32 %v1112, -0.4999988
    %v1114 = vmul.f32 %v1109, %v1113
    %v1115 = vadd.f32 1.0, %v1114
    %v1116 = vmul.f32 %v1107, %v1107
    %v1117 = vmul.f32 %v1116, -0.00019511016
    %v1118 = vadd.f32 %v1117, 0.008332121
    %v1119 = vmul.f32 %v1116, %v1118
    %v1120 = vadd.f32 %v1119, -0.16666654
    %v1121 = vmul.f32 %v1116, %v1120
    %v1122 = vadd.f32 %v1121, 1.0
    %v1123 = vmul.f32 %v1122, %v1107
    %vm1124 = vweird.f32 %v208
    %v1125 = vand.u32 %v1108, 3
    %vm1126 = vcmp.lt.s32.totalorder %v1125, 2
    %vm1127 = vcmp.eq.s32.totalorder %v1125, 0
    %v1128 = vxor.u32 %v1123, 2147483648
    %v1129 = vsel %vm1127, %v1115, %v1128
    %vm1130 = vcmp.eq.s32.totalorder %v1125, 2
    %v1131 = vxor.u32 %v1115, 2147483648
    %v1132 = vsel %vm1130, %v1131, %v1123
    %v1133 = vsel %vm1126, %v1129, %v1132
    %v1134 = vsel %vm1124, nan, %v1133
    %v1135 = vand.u32 2147483647, %v209
    %vm1136 = vcmp.le.f32.partialorder %v1135, 0.7853982
    %vm1137 = vcmp.lt.s32.totalorder %v209, 0
    %v1138 = vand.u32 %v209, 2139095040
    %v1139 = vshrl.u32 %v1138, 23
    %v1140 = vsub.s32 %v1139, 127
    %v1141 = vand.u32 2147483647, %v209
    %v1142 = vand.u32 %v1141, 8388607
    %v1143 = vor.u32 %v1142, 8388608
    %v1144 = vsub.s32 0, %v1143
    %v1145 = vadd.s32 %v1140, 1
    %vm1146 = vcmp.gt.s32.totalorder %v1145, 0
    %v1147 = vsel %vm1146, %v1145, 0
    %v1148 = vshrl.u32 %v1147, 5
    %v1149 = vand.u32 %v1147, 31
    %v1150 = vsub.s32 32, %v1149
    %v1151 = vshrl.u32 683565275, %v1150
    %v1152 = vshll.u32 683565275, %v1149
    %v1153 = vshrl.u32 2475754826, %v1150
    %v1154 = vor.u32 %v1152, %v1153
    %v1155 = vshll.u32 2475754826, %v1149
    %v1156 = vshrl.u32 2131351028, %v1150
    %v1157 = vor.u32 %v1155, %v1156
    %v1158 = vshll.u32 2131351028, %v1149
    %v1159 = vshrl.u32 2102212464, %v1150
    %v1160 = vor.u32 %v1158, %v1159
    %v1161 = vshll.u32 2102212464, %v1149
    %v1162 = vshrl.u32 920167782, %v1150
    %v1163 = vor.u32 %v1161, %v1162
    %v1164 = vshll.u32 920167782, %v1149
    %v1165 = vshrl.u32 1326507024, %v1150
    %v1166 = vor.u32 %v1164, %v1165
    %vm1167 = vcmp.lt.s32.totalorder %v1148, 1
    %vm1168 = vcmp.lt.s32.totalorder %v1148, 2
    %vm1169 = vcmp.lt.s32.totalorder %v1148, 3
    %vm1170 = vcmp.lt.s32.totalorder %v1148, 4
    %v1171 = vsel %vm1167, %v1151, %v1154
    %v1172 = vsel %vm1170, %v1160, 2102212464
    %v1173 = vsel %vm1169, %v1157, %v1172
    %v1174 = vsel %vm1168, %v1171, %v1173
    %v1175 = vsel %vm1167, %v1154, %v1157
    %v1176 = vsel %vm1170, %v1163, 920167782
    %v1177 = vsel %vm1169, %v1160, %v1176
    %v1178 = vsel %vm1168, %v1175, %v1177
    %v1179 = vsel %vm1167, %v1157, %v1160
    %v1180 = vsel %vm1170, %v1166, 1326507024
    %v1181 = vsel %vm1169, %v1163, %v1180
    %v1182 = vsel %vm1168, %v1179, %v1181
    %v1183 = vshll.u32 %v1143, 8
    %v1184 = vand.u32 %v1183, 65535
    %v1185 = vshrl.u32 %v1183, 16
    %v1186 = vand.u32 %v1182, 65535
    %v1187 = vshrl.u32 %v1182, 16
    %v1188 = vmul.u32 %v1184, %v1186
    %v1189 = vmul.u32 %v1184, %v1187
    %v1190 = vmul.u32 %v1185, %v1186
    %v1191 = vmul.u32 %v1185, %v1187
    %v1192 = vshll.u32 %v1189, 16
    %v1193 = vshrl.u32 %v1189, 16
    %v1194 = vshll.u32 %v1190, 16
    %v1195 = vshrl.u32 %v1190, 16
    %vm1196 = vc.u32 %v1188, %v1192
    %v1197 = vsel %vm1196, 1, 0
    %v1198 = vadd.s32 %v1188, %v1192
    %v1199 = vadd.s32 %v1191, %v1197
    %vm1200 = vc.u32 %v1198, %v1194
    %v1201 = vsel %vm1200, 1, 0
    %v1202 = vadd.s32 %v1198, %v1194
    %v1203 = vadd.s32 %v1199, %v1201
    %v1204 = vadd.s32 %v1203, %v1193
    %v1205 = vadd.s32 %v1204, %v1195
    %v1206 = vand.u32 %v1183, 65535
    %v1207 = vshrl.u32 %v1183, 16
    %v1208 = vand.u32 %v1178, 65535
    %v1209 = vshrl.u32 %v1178, 16
    %v1210 = vmul.u32 %v1206, %v1208
    %v1211 = vmul.u32 %v1206, %v1209
    %v1212 = vmul.u32 %v1207, %v1208
    %v1213 = vmul.u32 %v1207, %v1209
    %v1214 = vshll.u32 %v1211, 16
    %v1215 = vshrl.u32 %v1211, 16
    %v1216 = vshll.u32 %v1212, 16
    %v1217 = vshrl.u32 %v1212, 16
    %vm1218 = vc.u32 %v1210, %v1214
    %v1219 = vsel %vm1218, 1, 0
    %v1220 = vadd.s32 %v1210, %v1214
    %v1221 = vadd.s32 %v1213, %v1219
    %vm1222 = vc.u32 %v1220, %v1216
    %v1223 = vsel %vm1222, 1, 0
    %v1224 = vadd.s32 %v1220, %v1216
    %v1225 = vadd.s32 %v1221, %v1223
    %v1226 = vadd.s32 %v1225, %v1215
    %v1227 = vadd.s32 %v1226, %v1217
    %v1228 = vmul.u32 %v1183, %v1174
    %v1229 = vadd.s32 %v1205, %v1224
    %vm1230 = vc.u32 %v1205, %v1224
    %v1231 = vadd.s32 %v1227, 1
    %v1232 = vsel %vm1230, %v1231, %v1227
    %v1233 = vadd.s32 %v1228, %v1232
    %v1234 = vadd.s32 %v1233, 536870912
    %v1235 = vshrl.u32 %v1234, 30
    %v1236 = vshll.u32 %v1235, 30
    %v1237 = vsub.s32 %v1233, %v1236
    %vm1238 = vcmp.lt.s32.totalorder %v1237, 0
    %v1239 = vsub.s32 0, %v1237
    %v1240 = vsel %vm1238, %v1239, %v1237
    %v1241 = vclz %v1240
    %v1242 = vsub.s32 %v1241, 2
    %vm1243 = vcmp.gt.s32.totalorder 0, %v1242
    %v1244 = vsel %vm1243, 0, %v1242
    %v1245 = vsub.s32 32, %v1244
    %v1246 = vshll.u32 %v1237, %v1244
    %v1247 = vshrl.u32 %v1229, %v1245
    %v1248 = vor.u32 %v1246, %v1247
    %v1249 = vsub.s32 4294967266, %v1244
    %v1250 = vadd.s32 %v1249, 127
    %v1251 = vshll.u32 %v1250, 23
    %v1252 = vor.u32 4788187, %v1251
    %v1253 = vand.u32 2147483647, %v1252
    %v1255 = vcvt.s32.f32 %v1248
    %v1256 = vmul.f32 %v1255, %v1253
    %v1257 = vxor.u32 %v1256, 2147483648
    %v1258 = vsel %vm1137, %v1257, %v1256
    %v1259 = vsub.s32 4, %v1235
    %v1260 = vsel %vm1137, %v1259, %v1235
    %v1261 = vsel %vm1136, %v209, %v1258
    %v1262 = vsel %vm1136, 0, %v1260
    %v1263 = vmul.f32 %v1261, %v1261
    %v1264 = vmul.f32 %v1263, -0.001358992
    %v1265 = vadd.f32 %v1264, 0.041655596
    %v1266 = vmul.f32 %v1263, %v1265
    %v1267 = vadd.f32 %v1266, -0.4999988
    %v1268 = vmul.f32 %v1263, %v1267
    %v1269 = vadd.f32 1.0, %v1268
    %v1270 = vmul.f32 %v1261, %v1261
    %v1271 = vmul.f32 %v1270, -0.00019511016
    %v1272 = vadd.f32 %v1271, 0.008332121
    %v1273 = vmul.f32 %v1270, %v1272
    %v1274 = vadd.f32 %v1273, -0.16666654
    %v1275 = vmul.f32 %v1270, %v1274
    %v1276 = vadd.f32 %v1275, 1.0
    %v1277 = vmul.f32 %v1276, %v1261
    %vm1278 = vweird.f32 %v209
    %v1279 = vand.u32 %v1262, 3
    %vm1280 = vcmp.lt.s32.totalorder %v1279, 2
    %vm1281 = vcmp.eq.s32.totalorder %v1279, 0
    %v1282 = vxor.u32 %v1277, 2147483648
    %v1283 = vsel %vm1281, %v1269, %v1282
    %vm1284 = vcmp.eq.s32.totalorder %v1279, 2
    %v1285 = vxor.u32 %v1269, 2147483648
    %v1286 = vsel %vm1284, %v1285, %v1277
    %v1287 = vsel %vm1280, %v1283, %v1286
    %v1288 = vsel %vm1278, nan, %v1287
    %v1289 = vand.u32 2147483647, %v210
    %vm1290 = vcmp.le.f32.partialorder %v1289, 0.7853982
    %vm1291 = vcmp.lt.s32.totalorder %v210, 0
    %v1292 = vand.u32 %v210, 2139095040
    %v1293 = vshrl.u32 %v1292, 23
    %v1294 = vsub.s32 %v1293, 127
    %v1295 = vand.u32 2147483647, %v210
    %v1296 = vand.u32 %v1295, 8388607
    %v1297 = vor.u32 %v1296, 8388608
    %v1298 = vsub.s32 0, %v1297
    %v1299 = vadd.s32 %v1294, 1
    %vm1300 = vcmp.gt.s32.totalorder %v1299, 0
    %v1301 = vsel %vm1300, %v1299, 0
    %v1302 = vshrl.u32 %v1301, 5
    %v1303 = vand.u32 %v1301, 31
    %v1304 = vsub.s32 32, %v1303
    %v1305 = vshrl.u32 683565275, %v1304
    %v1306 = vshll.u32 683565275, %v1303
    %v1307 = vshrl.u32 2475754826, %v1304
    %v1308 = vor.u32 %v1306, %v1307
    %v1309 = vshll.u32 2475754826, %v1303
    %v1310 = vshrl.u32 2131351028, %v1304
    %v1311 = vor.u32 %v1309, %v1310
    %v1312 = vshll.u32 2131351028, %v1303
    %v1313 = vshrl.u32 2102212464, %v1304
    %v1314 = vor.u32 %v1312, %v1313
    %v1315 = vshll.u32 2102212464, %v1303
    %v1316 = vshrl.u32 920167782, %v1304
    %v1317 = vor.u32 %v1315, %v1316
    %v1318 = vshll.u32 920167782, %v1303
    %v1319 = vshrl.u32 1326507024, %v1304
    %v1320 = vor.u32 %v1318, %v1319
    %vm1321 = vcmp.lt.s32.totalorder %v1302, 1
    %vm1322 = vcmp.lt.s32.totalorder %v1302, 2
    %vm1323 = vcmp.lt.s32.totalorder %v1302, 3
    %vm1324 = vcmp.lt.s32.totalorder %v1302, 4
    %v1325 = vsel %vm1321, %v1305, %v1308
    %v1326 = vsel %vm1324, %v1314, 2102212464
    %v1327 = vsel %vm1323, %v1311, %v1326
    %v1328 = vsel %vm1322, %v1325, %v1327
    %v1329 = vsel %vm1321, %v1308, %v1311
    %v1330 = vsel %vm1324, %v1317, 920167782
    %v1331 = vsel %vm1323, %v1314, %v1330
    %v1332 = vsel %vm1322, %v1329, %v1331
    %v1333 = vsel %vm1321, %v1311, %v1314
    %v1334 = vsel %vm1324, %v1320, 1326507024
    %v1335 = vsel %vm1323, %v1317, %v1334
    %v1336 = vsel %vm1322, %v1333, %v1335
    %v1337 = vshll.u32 %v1297, 8
    %v1338 = vand.u32 %v1337, 65535
    %v1339 = vshrl.u32 %v1337, 16
    %v1340 = vand.u32 %v1336, 65535
    %v1341 = vshrl.u32 %v1336, 16
    %v1342 = vmul.u32 %v1338, %v1340
    %v1343 = vmul.u32 %v1338, %v1341
    %v1344 = vmul.u32 %v1339, %v1340
    %v1345 = vmul.u32 %v1339, %v1341
    %v1346 = vshll.u32 %v1343, 16
    %v1347 = vshrl.u32 %v1343, 16
    %v1348 = vshll.u32 %v1344, 16
    %v1349 = vshrl.u32 %v1344, 16
    %vm1350 = vc.u32 %v1342, %v1346
    %v1351 = vsel %vm1350, 1, 0
    %v1352 = vadd.s32 %v1342, %v1346
    %v1353 = vadd.s32 %v1345, %v1351
    %vm1354 = vc.u32 %v1352, %v1348
    %v1355 = vsel %vm1354, 1, 0
    %v1356 = vadd.s32 %v1352, %v1348
    %v1357 = vadd.s32 %v1353, %v1355
    %v1358 = vadd.s32 %v1357, %v1347
    %v1359 = vadd.s32 %v1358, %v1349
    %v1360 = vand.u32 %v1337, 65535
    %v1361 = vshrl.u32 %v1337, 16
    %v1362 = vand.u32 %v1332, 65535
    %v1363 = vshrl.u32 %v1332, 16
    %v1364 = vmul.u32 %v1360, %v1362
    %v1365 = vmul.u32 %v1360, %v1363
    %v1366 = vmul.u32 %v1361, %v1362
    %v1367 = vmul.u32 %v1361, %v1363
    %v1368 = vshll.u32 %v1365, 16
    %v1369 = vshrl.u32 %v1365, 16
    %v1370 = vshll.u32 %v1366, 16
    %v1371 = vshrl.u32 %v1366, 16
    %vm1372 = vc.u32 %v1364, %v1368
    %v1373 = vsel %vm1372, 1, 0
    %v1374 = vadd.s32 %v1364, %v1368
    %v1375 = vadd.s32 %v1367, %v1373
    %vm1376 = vc.u32 %v1374, %v1370
    %v1377 = vsel %vm1376, 1, 0
    %v1378 = vadd.s32 %v1374, %v1370
    %v1379 = vadd.s32 %v1375, %v1377
    %v1380 = vadd.s32 %v1379, %v1369
    %v1381 = vadd.s32 %v1380, %v1371
    %v1382 = vmul.u32 %v1337, %v1328
    %v1383 = vadd.s32 %v1359, %v1378
    %vm1384 = vc.u32 %v1359, %v1378
    %v1385 = vadd.s32 %v1381, 1
    %v1386 = vsel %vm1384, %v1385, %v1381
    %v1387 = vadd.s32 %v1382, %v1386
    %v1388 = vadd.s32 %v1387, 536870912
    %v1389 = vshrl.u32 %v1388, 30
    %v1390 = vshll.u32 %v1389, 30
    %v1391 = vsub.s32 %v1387, %v1390
    %vm1392 = vcmp.lt.s32.totalorder %v1391, 0
    %v1393 = vsub.s32 0, %v1391
    %v1394 = vsel %vm1392, %v1393, %v1391
    %v1395 = vclz %v1394
    %v1396 = vsub.s32 %v1395, 2
    %vm1397 = vcmp.gt.s32.totalorder 0, %v1396
    %v1398 = vsel %vm1397, 0, %v1396
    %v1399 = vsub.s32 32, %v1398
    %v1400 = vshll.u32 %v1391, %v1398
    %v1401 = vshrl.u32 %v1383, %v1399
    %v1402 = vor.u32 %v1400, %v1401
    %v1403 = vsub.s32 4294967266, %v1398
    %v1404 = vadd.s32 %v1403, 127
    %v1405 = vshll.u32 %v1404, 23
    %v1406 = vor.u32 4788187, %v1405
    %v1407 = vand.u32 2147483647, %v1406
    %v1409 = vcvt.s32.f32 %v1402
    %v1410 = vmul.f32 %v1409, %v1407
    %v1411 = vxor.u32 %v1410, 2147483648
    %v1412 = vsel %vm1291, %v1411, %v1410
    %v1413 = vsub.s32 4, %v1389
    %v1414 = vsel %vm1291, %v1413, %v1389
    %v1415 = vsel %vm1290, %v210, %v1412
    %v1416 = vsel %vm1290, 0, %v1414
    %v1417 = vmul.f32 %v1415, %v1415
    %v1418 = vmul.f32 %v1417, -0.001358992
    %v1419 = vadd.f32 %v1418, 0.041655596
    %v1420 = vmul.f32 %v1417, %v1419
    %v1421 = vadd.f32 %v1420, -0.4999988
    %v1422 = vmul.f32 %v1417, %v1421
    %v1423 = vadd.f32 1.0, %v1422
    %v1424 = vmul.f32 %v1415, %v1415
    %v1425 = vmul.f32 %v1424, -0.00019511016
    %v1426 = vadd.f32 %v1425, 0.008332121
    %v1427 = vmul.f32 %v1424, %v1426
    %v1428 = vadd.f32 %v1427, -0.16666654
    %v1429 = vmul.f32 %v1424, %v1428
    %v1430 = vadd.f32 %v1429, 1.0
    %v1431 = vmul.f32 %v1430, %v1415
    %vm1432 = vweird.f32 %v210
    %v1433 = vand.u32 %v1416, 3
    %vm1434 = vcmp.lt.s32.totalorder %v1433, 2
    %vm1435 = vcmp.eq.s32.totalorder %v1433, 0
    %v1436 = vxor.u32 %v1431, 2147483648
    %v1437 = vsel %vm1435, %v1423, %v1436
    %vm1438 = vcmp.eq.s32.totalorder %v1433, 2
    %v1439 = vxor.u32 %v1423, 2147483648
    %v1440 = vsel %vm1438, %v1439, %v1431
    %v1441 = vsel %vm1434, %v1437, %v1440
    %v1442 = vsel %vm1432, nan, %v1441
    %v1443 = vperm.slane %v67, 1
    %v1444 = vmul.f32 %v1443, %v364
    %v1445 = vmul.f32 %v1443, %v518
    %v1446 = vmul.f32 %v1443, %v672
    %v1447 = vmul.f32 %v1443, %v826
    %v1448 = vmul.f32 %v1443, %v980
    %v1449 = vmul.f32 %v1443, %v1134
    %v1450 = vmul.f32 %v1443, %v1288
    %v1451 = vmul.f32 %v1443, %v1442
    %v1452 = vadd.f32 %v1444, %v171
    %v1453 = vadd.f32 %v1445, %v174
    %v1454 = vadd.f32 %v1446, %v177
    %v1455 = vadd.f32 %v1447, %v180
    %v1456 = vadd.f32 %v1448, %v183
    %v1457 = vadd.f32 %v1449, %v186
    %v1458 = vadd.f32 %v1450, %v189
    %v1459 = vadd.f32 %v1451, %v192
    %1460 = vst [vmem:[#allocation7] sm:$0xff] %v1452
    %1461 = vst [vmem:[#allocation7 + $0x8] sm:$0xff] %v1453
    %1462 = vst [vmem:[#allocation7 + $0x10] sm:$0xff] %v1454
    %1463 = vst [vmem:[#allocation7 + $0x18] sm:$0xff] %v1455
    %1464 = vst [vmem:[#allocation7 + $0x20] sm:$0xff] %v1456
    %1465 = vst [vmem:[#allocation7 + $0x28] sm:$0xff] %v1457
    %1466 = vst [vmem:[#allocation7 + $0x30] sm:$0xff] %v1458
    %1467 = vst [vmem:[#allocation7 + $0x38] sm:$0xff] %v1459
    // Predicated region
    $region30: #{tpu_custom_call.1} parent=1 // pred_check
      _
    $region31: #{tpu_custom_call.1} parent=1 // pred_check_branch
      %1469 = sbr.rel (0) target = $region33
    $region32: #{tpu_custom_call.1} parent=1 // pred_region
      %1471 = vsyncadd [#allocation4], 0
      %s1472 = sshll.u32 [#allocation7], 4
      %s1473 = int_to_ptr.vmem [resolvable:$true] %s1472
      %s1474 = sshll.u32 %s5, 4
      %s1475 = int_to_ptr.hbm [resolvable:$true] %s1474
      %1480 = dma.vmem_to_hbm [thread:$0]  %s1473, 1024, %s1475, [#allocation4], 128, 128, 8
    $region33: #{tpu_custom_call.1} parent=1 // pred_fallthru
      _
    // Predicated region
    $region34: #{tpu_custom_call.1} parent=1 // pred_check
      _
    $region35: #{tpu_custom_call.1} parent=1 // pred_check_branch
      %1482 = sbr.rel (0) target = $region37
    $region36: #{tpu_custom_call.1} parent=1 // pred_region
      %1484 = dma.done [#allocation4], 1024
    $region37: #{tpu_custom_call.1} parent=1 // pred_fallthru
      _
    %1485 = vsyncpa [#allocation3], 1
    %1486 = vsyncpa [#allocation6], 1
    %1487 = vsyncpa [#allocation4], 1

// kernel: tpu_custom_call.1
$region0: #{tpu_custom_call.1}
  #allocation0 [shape = 'u32[]', space=smem, size = 0x4, offset = 0x4, fixed_abs, tag = 'smem constant byte address 0x4 - core index']
  #allocation1 [shape = 'u32[72,128]{1,0:T(1,128)}', space=vmem, size = 0x9000, scoped, tag = 'internal scratch']
  %s0 = inlined_call_operand.vmem [shape: f32[64,16], index: 0, kind: input, shape index: {}]
  %s1 = inlined_call_operand.vmem [shape: f32[64,128], index: 1, kind: input, shape index: {}]
  %s2 = inlined_call_operand.vmem [shape: f32[16,128], index: 2, kind: input, shape index: {}]
  %s3 = inlined_call_operand.hbm [shape: f32[128,128], index: 3, kind: input, shape index: {}]
  %s4 = inlined_call_operand.hbm [shape: f32[3,128], index: 4, kind: input, shape index: {}]
  %s5 = inlined_call_operand.hbm [shape: f32[64,128], index: 5, kind: output, shape index: {}]
  %s6 = sld [smem:[#allocation0]]
  $region38: #{tpu_custom_call.1} parent=0
    _
  %s8 = ssub.s32 1, %s6
  %s9 = scalar_select 0, %s8, %s6
  $region1: #{tpu_custom_call.1} parent=0
    #allocation2 [shape = 'u8[65536]{0}', space=vmem, size = 0x10000, scoped, tag = 'input window, operand 3, single buffered']
    #allocation3 [shape = 's32[1]{0}', space=sflag, size = 0x4, scoped, tag = 'scoped memory for tpu_custom_call.1']
    #allocation4 [shape = 's32[1]{0}', space=sflag, size = 0x4, scoped, tag = 'scoped memory for tpu_custom_call.1']
    #allocation5 [shape = 'u8[2048]{0}', space=vmem, size = 0x800, scoped, tag = 'input window, operand 4, single buffered']
    #allocation6 [shape = 's32[1]{0}', space=sflag, size = 0x4, scoped, tag = 'scoped memory for tpu_custom_call.1']
    #allocation7 [shape = 'u8[32768]{0}', space=vmem, size = 0x8000, scoped, tag = 'output window, operand 0, single buffered']
    %10 = vsyncpa [#allocation3], 0
    %11 = vsyncpa [#allocation6], 0
    %12 = vsyncpa [#allocation4], 0
    // Predicated region
    $region2: #{tpu_custom_call.1} parent=1 // pred_check
      _
    $region3: #{tpu_custom_call.1} parent=1 // pred_check_branch
      %14 = sbr.rel (0) target = $region5
    $region4: #{tpu_custom_call.1} parent=1 // pred_region
      _
    $region5: #{tpu_custom_call.1} parent=1 // pred_fallthru
      _
    // Predicated region
    $region6: #{tpu_custom_call.1} parent=1 // pred_check
      _
    $region7: #{tpu_custom_call.1} parent=1 // pred_check_branch
      %16 = sbr.rel (0) target = $region9
    $region8: #{tpu_custom_call.1} parent=1 // pred_region
      _
    $region9: #{tpu_custom_call.1} parent=1 // pred_fallthru
      _
    // Predicated region
    $region10: #{tpu_custom_call.1} parent=1 // pred_check
      _
    $region11: #{tpu_custom_call.1} parent=1 // pred_check_branch
      %18 = sbr.rel (0) target = $region13
    $region12: #{tpu_custom_call.1} parent=1 // pred_region
      _
    $region13: #{tpu_custom_call.1} parent=1 // pred_fallthru
      _
    // Predicated region
    $region14: #{tpu_custom_call.1} parent=1 // pred_check
      _
    $region15: #{tpu_custom_call.1} parent=1 // pred_check_branch
      %20 = sbr.rel (0) target = $region17
    $region16: #{tpu_custom_call.1} parent=1 // pred_region
      %22 = vsyncadd [#allocation3], 0
      %s23 = sshll.u32 %s3, 4
      %s24 = int_to_ptr.hbm [resolvable:$true] %s23
      %s25 = sshll.u32 [#allocation2], 4
      %s26 = int_to_ptr.vmem [resolvable:$true] %s25
      %31 = dma.hbm_to_vmem [thread:$0]  %s24, 2048, %s26, [#allocation3], 128, 128, 8
    $region17: #{tpu_custom_call.1} parent=1 // pred_fallthru
      _
    // Predicated region
    $region18: #{tpu_custom_call.1} parent=1 // pred_check
      _
    $region19: #{tpu_custom_call.1} parent=1 // pred_check_branch
      %33 = sbr.rel (0) target = $region21
    $region20: #{tpu_custom_call.1} parent=1 // pred_region
      %35 = vsyncadd [#allocation6], 0
      %s37 = sshll.u32 %s4, 4
      %s38 = int_to_ptr.hbm [resolvable:$true] %s37
      %s39 = sshll.u32 [#allocation5], 4
      %s40 = int_to_ptr.vmem [resolvable:$true] %s39
      %42 = dma.hbm_to_vmem [thread:$0]  %s38, 64, %s40, [#allocation6]
    $region21: #{tpu_custom_call.1} parent=1 // pred_fallthru
      _
    // Predicated region
    $region22: #{tpu_custom_call.1} parent=1 // pred_check
      _
    $region23: #{tpu_custom_call.1} parent=1 // pred_check_branch
      %44 = sbr.rel (0) target = $region25
    $region24: #{tpu_custom_call.1} parent=1 // pred_region
      %46 = dma.done [#allocation3], 2048
    $region25: #{tpu_custom_call.1} parent=1 // pred_fallthru
      _
    // Predicated region
    $region26: #{tpu_custom_call.1} parent=1 // pred_check
      _
    $region27: #{tpu_custom_call.1} parent=1 // pred_check_branch
      %48 = sbr.rel (0) target = $region29
    $region28: #{tpu_custom_call.1} parent=1 // pred_region
      %50 = dma.done [#allocation6], 64
    $region29: #{tpu_custom_call.1} parent=1 // pred_fallthru
      _
    %v51 = vld [vmem:[%s0] sm:$0xff]
    %v52 = vld [vmem:[%s0 + $0x8] sm:$0xff]
    %v53 = vld [vmem:[%s0 + $0x10] sm:$0xff]
    %v54 = vld [vmem:[%s0 + $0x18] sm:$0xff]
    %v55 = vld [vmem:[%s0 + $0x20] sm:$0xff]
    %v56 = vld [vmem:[%s0 + $0x28] sm:$0xff]
    %v57 = vld [vmem:[%s0 + $0x30] sm:$0xff]
    %v58 = vld [vmem:[%s0 + $0x38] sm:$0xff]
    %v59 = vld [vmem:[%s1] sm:$0xff]
    %v60 = vld [vmem:[%s1 + $0x8] sm:$0xff]
    %v61 = vld [vmem:[%s1 + $0x10] sm:$0xff]
    %v62 = vld [vmem:[%s1 + $0x18] sm:$0xff]
    %v63 = vld [vmem:[%s1 + $0x20] sm:$0xff]
    %v64 = vld [vmem:[%s1 + $0x28] sm:$0xff]
    %v65 = vld [vmem:[%s1 + $0x30] sm:$0xff]
    %v66 = vld [vmem:[%s1 + $0x38] sm:$0xff]
    %v67 = vld [vmem:[#allocation5] sm:$0x7]
    %v68 = vld [vmem:[%s2] sm:$0xff]
    %v69 = vld [vmem:[%s2 + $0x8] sm:$0xff]
    %v70 = vperm.slane %v67, 0
    %vm71 = vcmask 130048
    %v73 = vsel %vm71, %v51, 0
    %v76 = vsel %vm71, %v52, 0
    %v79 = vsel %vm71, %v53, 0
    %v82 = vsel %vm71, %v54, 0
    %v85 = vsel %vm71, %v55, 0
    %v88 = vsel %vm71, %v56, 0
    %v91 = vsel %vm71, %v57, 0
    %v94 = vsel %vm71, %v58, 0
    %96 = vmatpush.msra.mxu0 0.0
    %97 = vmatpush.msra.mxu0 0.0
    %98 = vmatpush.msra.mxu0 0.0
    %99 = vmatpush.msra.mxu0 0.0
    %100 = vmatpush.msra.mxu0 0.0
    %101 = vmatpush.msra.mxu0 0.0
    %102 = vmatpush.msra.mxu0 0.0
    %103 = vmatpush.msra.mxu0 0.0
    %104 = vmatpush.msra.mxu0 0.0
    %105 = vmatpush.msra.mxu0 0.0
    %106 = vmatpush.msra.mxu0 0.0
    %107 = vmatpush.msra.mxu0 0.0
    %108 = vmatpush.msra.mxu0 0.0
    %109 = vmatpush.msra.mxu0 0.0
    %110 = vmatpush.msra.mxu0 %v69
    %111 = vmatpush.msra.mxu0 %v68
    %112 = vmatmul.f32.gmra.mxu0 %v73
    %v113 = vpop.f32.mrf.mxu0
    %v114 = vadd.f32 %v70, %v113
    %115 = vmatmul.f32.gmra.mxu0 %v76
    %v116 = vpop.f32.mrf.mxu0
    %v117 = vadd.f32 %v70, %v116
    %118 = vmatmul.f32.gmra.mxu0 %v79
    %v119 = vpop.f32.mrf.mxu0
    %v120 = vadd.f32 %v70, %v119
    %121 = vmatmul.f32.gmra.mxu0 %v82
    %v122 = vpop.f32.mrf.mxu0
    %v123 = vadd.f32 %v70, %v122
    %124 = vmatmul.f32.gmra.mxu0 %v85
    %v125 = vpop.f32.mrf.mxu0
    %v126 = vadd.f32 %v70, %v125
    %127 = vmatmul.f32.gmra.mxu0 %v88
    %v128 = vpop.f32.mrf.mxu0
    %v129 = vadd.f32 %v70, %v128
    %130 = vmatmul.f32.gmra.mxu0 %v91
    %v131 = vpop.f32.mrf.mxu0
    %v132 = vadd.f32 %v70, %v131
    %133 = vmatmul.f32.gmra.mxu0 %v94
    %v134 = vpop.f32.mrf.mxu0
    %v135 = vadd.f32 %v70, %v134
    %136 = vdwg.mxu0
    %v137 = vld [vmem:[#allocation2] sm:$0xff]
    %v138 = vld [vmem:[#allocation2 + $0x8] sm:$0xff]
    %v139 = vld [vmem:[#allocation2 + $0x10] sm:$0xff]
    %v140 = vld [vmem:[#allocation2 + $0x18] sm:$0xff]
    %v141 = vld [vmem:[#allocation2 + $0x20] sm:$0xff]
    %v142 = vld [vmem:[#allocation2 + $0x28] sm:$0xff]
    %v143 = vld [vmem:[#allocation2 + $0x30] sm:$0xff]
    %v144 = vld [vmem:[#allocation2 + $0x38] sm:$0xff]
    %v145 = vld [vmem:[#allocation2 + $0x40] sm:$0xff]
    %v146 = vld [vmem:[#allocation2 + $0x48] sm:$0xff]
    %v147 = vld [vmem:[#allocation2 + $0x50] sm:$0xff]
    %v148 = vld [vmem:[#allocation2 + $0x58] sm:$0xff]
    %v149 = vld [vmem:[#allocation2 + $0x60] sm:$0xff]
    %v150 = vld [vmem:[#allocation2 + $0x68] sm:$0xff]
    %v151 = vld [vmem:[#allocation2 + $0x70] sm:$0xff]
    %v152 = vld [vmem:[#allocation2 + $0x78] sm:$0xff]
    %153 = vmatpush.msra.mxu0 %v152
    %154 = vmatpush.msra.mxu0 %v151
    %155 = vmatpush.msra.mxu0 %v150
    %156 = vmatpush.msra.mxu0 %v149
    %157 = vmatpush.msra.mxu0 %v148
    %158 = vmatpush.msra.mxu0 %v147
    %159 = vmatpush.msra.mxu0 %v146
    %160 = vmatpush.msra.mxu0 %v145
    %161 = vmatpush.msra.mxu0 %v144
    %162 = vmatpush.msra.mxu0 %v143
    %163 = vmatpush.msra.mxu0 %v142
    %164 = vmatpush.msra.mxu0 %v141
    %165 = vmatpush.msra.mxu0 %v140
    %166 = vmatpush.msra.mxu0 %v139
    %167 = vmatpush.msra.mxu0 %v138
    %168 = vmatpush.msra.mxu0 %v137
    %169 = vmatmul.f32.gmra.mxu0 %v59
    %v170 = vpop.f32.mrf.mxu0
    %v171 = vadd.f32 0.0, %v170
    %172 = vmatmul.f32.gmra.mxu0 %v60
    %v173 = vpop.f32.mrf.mxu0
    %v174 = vadd.f32 0.0, %v173
    %175 = vmatmul.f32.gmra.mxu0 %v61
    %v176 = vpop.f32.mrf.mxu0
    %v177 = vadd.f32 0.0, %v176
    %178 = vmatmul.f32.gmra.mxu0 %v62
    %v179 = vpop.f32.mrf.mxu0
    %v180 = vadd.f32 0.0, %v179
    %181 = vmatmul.f32.gmra.mxu0 %v63
    %v182 = vpop.f32.mrf.mxu0
    %v183 = vadd.f32 0.0, %v182
    %184 = vmatmul.f32.gmra.mxu0 %v64
    %v185 = vpop.f32.mrf.mxu0
    %v186 = vadd.f32 0.0, %v185
    %187 = vmatmul.f32.gmra.mxu0 %v65
    %v188 = vpop.f32.mrf.mxu0
    %v189 = vadd.f32 0.0, %v188
    %190 = vmatmul.f32.gmra.mxu0 %v66
    %v191 = vpop.f32.mrf.mxu0
    %v192 = vadd.f32 0.0, %v191
    %193 = vdwg.mxu0
    %v194 = vperm.slane %v67, 2
    %v195 = vmul.f32 %v194, %v59
    %v196 = vmul.f32 %v194, %v60
    %v197 = vmul.f32 %v194, %v61
    %v198 = vmul.f32 %v194, %v62
    %v199 = vmul.f32 %v194, %v63
    %v200 = vmul.f32 %v194, %v64
    %v201 = vmul.f32 %v194, %v65
    %v202 = vmul.f32 %v194, %v66
    %v203 = vadd.f32 %v195, %v114
    %v204 = vadd.f32 %v196, %v117
    %v205 = vadd.f32 %v197, %v120
    %v206 = vadd.f32 %v198, %v123
    %v207 = vadd.f32 %v199, %v126
    %v208 = vadd.f32 %v200, %v129
    %v209 = vadd.f32 %v201, %v132
    %v210 = vadd.f32 %v202, %v135
    %v211 = vand.u32 2147483647, %v203
    %vm212 = vcmp.le.f32.partialorder %v211, 0.7853982
    %vm213 = vcmp.lt.s32.totalorder %v203, 0
    %v214 = vand.u32 %v203, 2139095040
    %v215 = vshrl.u32 %v214, 23
    %v216 = vsub.s32 %v215, 127
    %v217 = vand.u32 2147483647, %v203
    %v218 = vand.u32 %v217, 8388607
    %v219 = vor.u32 %v218, 8388608
    %v220 = vsub.s32 0, %v219
    %v221 = vadd.s32 %v216, 1
    %vm222 = vcmp.gt.s32.totalorder %v221, 0
    %v223 = vsel %vm222, %v221, 0
    %v224 = vshrl.u32 %v223, 5
    %v225 = vand.u32 %v223, 31
    %v226 = vsub.s32 32, %v225
    %v227 = vshrl.u32 683565275, %v226
    %v228 = vshll.u32 683565275, %v225
    %v229 = vshrl.u32 2475754826, %v226
    %v230 = vor.u32 %v228, %v229
    %v231 = vshll.u32 2475754826, %v225
    %v232 = vshrl.u32 2131351028, %v226
    %v233 = vor.u32 %v231, %v232
    %v234 = vshll.u32 2131351028, %v225
    %v235 = vshrl.u32 2102212464, %v226
    %v236 = vor.u32 %v234, %v235
    %v237 = vshll.u32 2102212464, %v225
    %v238 = vshrl.u32 920167782, %v226
    %v239 = vor.u32 %v237, %v238
    %v240 = vshll.u32 920167782, %v225
    %v241 = vshrl.u32 1326507024, %v226
    %v242 = vor.u32 %v240, %v241
    %vm243 = vcmp.lt.s32.totalorder %v224, 1
    %vm244 = vcmp.lt.s32.totalorder %v224, 2
    %vm245 = vcmp.lt.s32.totalorder %v224, 3
    %vm246 = vcmp.lt.s32.totalorder %v224, 4
    %v247 = vsel %vm243, %v227, %v230
    %v248 = vsel %vm246, %v236, 2102212464
    %v249 = vsel %vm245, %v233, %v248
    %v250 = vsel %vm244, %v247, %v249
    %v251 = vsel %vm243, %v230, %v233
    %v252 = vsel %vm246, %v239, 920167782
    %v253 = vsel %vm245, %v236, %v252
    %v254 = vsel %vm244, %v251, %v253
    %v255 = vsel %vm243, %v233, %v236
    %v256 = vsel %vm246, %v242, 1326507024
    %v257 = vsel %vm245, %v239, %v256
    %v258 = vsel %vm244, %v255, %v257
    %v259 = vshll.u32 %v219, 8
    %v260 = vand.u32 %v259, 65535
    %v261 = vshrl.u32 %v259, 16
    %v262 = vand.u32 %v258, 65535
    %v263 = vshrl.u32 %v258, 16
    %v264 = vmul.u32 %v260, %v262
    %v265 = vmul.u32 %v260, %v263
    %v266 = vmul.u32 %v261, %v262
    %v267 = vmul.u32 %v261, %v263
    %v268 = vshll.u32 %v265, 16
    %v269 = vshrl.u32 %v265, 16
    %v270 = vshll.u32 %v266, 16
    %v271 = vshrl.u32 %v266, 16
    %vm272 = vc.u32 %v264, %v268
    %v273 = vsel %vm272, 1, 0
    %v274 = vadd.s32 %v264, %v268
    %v275 = vadd.s32 %v267, %v273
    %vm276 = vc.u32 %v274, %v270
    %v277 = vsel %vm276, 1, 0
    %v278 = vadd.s32 %v274, %v270
    %v279 = vadd.s32 %v275, %v277
    %v280 = vadd.s32 %v279, %v269
    %v281 = vadd.s32 %v280, %v271
    %v282 = vand.u32 %v259, 65535
    %v283 = vshrl.u32 %v259, 16
    %v284 = vand.u32 %v254, 65535
    %v285 = vshrl.u32 %v254, 16
    %v286 = vmul.u32 %v282, %v284
    %v287 = vmul.u32 %v282, %v285
    %v288 = vmul.u32 %v283, %v284
    %v289 = vmul.u32 %v283, %v285
    %v290 = vshll.u32 %v287, 16
    %v291 = vshrl.u32 %v287, 16
    %v292 = vshll.u32 %v288, 16
    %v293 = vshrl.u32 %v288, 16
    %vm294 = vc.u32 %v286, %v290
    %v295 = vsel %vm294, 1, 0
    %v296 = vadd.s32 %v286, %v290
    %v297 = vadd.s32 %v289, %v295
    %vm298 = vc.u32 %v296, %v292
    %v299 = vsel %vm298, 1, 0
    %v300 = vadd.s32 %v296, %v292
    %v301 = vadd.s32 %v297, %v299
    %v302 = vadd.s32 %v301, %v291
    %v303 = vadd.s32 %v302, %v293
    %v304 = vmul.u32 %v259, %v250
    %v305 = vadd.s32 %v281, %v300
    %vm306 = vc.u32 %v281, %v300
    %v307 = vadd.s32 %v303, 1
    %v308 = vsel %vm306, %v307, %v303
    %v309 = vadd.s32 %v304, %v308
    %v310 = vadd.s32 %v309, 536870912
    %v311 = vshrl.u32 %v310, 30
    %v312 = vshll.u32 %v311, 30
    %v313 = vsub.s32 %v309, %v312
    %vm314 = vcmp.lt.s32.totalorder %v313, 0
    %v315 = vsub.s32 0, %v313
    %v316 = vsel %vm314, %v315, %v313
    %v317 = vclz %v316
    %v318 = vsub.s32 %v317, 2
    %vm319 = vcmp.gt.s32.totalorder 0, %v318
    %v320 = vsel %vm319, 0, %v318
    %v321 = vsub.s32 32, %v320
    %v322 = vshll.u32 %v313, %v320
    %v323 = vshrl.u32 %v305, %v321
    %v324 = vor.u32 %v322, %v323
    %v325 = vsub.s32 4294967266, %v320
    %v326 = vadd.s32 %v325, 127
    %v327 = vshll.u32 %v326, 23
    %v328 = vor.u32 4788187, %v327
    %v329 = vand.u32 2147483647, %v328
    %v331 = vcvt.s32.f32 %v324
    %v332 = vmul.f32 %v331, %v329
    %v333 = vxor.u32 %v332, 2147483648
    %v334 = vsel %vm213, %v333, %v332
    %v335 = vsub.s32 4, %v311
    %v336 = vsel %vm213, %v335, %v311
    %v337 = vsel %vm212, %v203, %v334
    %v338 = vsel %vm212, 0, %v336
    %v339 = vmul.f32 %v337, %v337
    %v340 = vmul.f32 %v339, -0.001358992
    %v341 = vadd.f32 %v340, 0.041655596
    %v342 = vmul.f32 %v339, %v341
    %v343 = vadd.f32 %v342, -0.4999988
    %v344 = vmul.f32 %v339, %v343
    %v345 = vadd.f32 1.0, %v344
    %v346 = vmul.f32 %v337, %v337
    %v347 = vmul.f32 %v346, -0.00019511016
    %v348 = vadd.f32 %v347, 0.008332121
    %v349 = vmul.f32 %v346, %v348
    %v350 = vadd.f32 %v349, -0.16666654
    %v351 = vmul.f32 %v346, %v350
    %v352 = vadd.f32 %v351, 1.0
    %v353 = vmul.f32 %v352, %v337
    %vm354 = vweird.f32 %v203
    %v355 = vand.u32 %v338, 3
    %vm356 = vcmp.lt.s32.totalorder %v355, 2
    %vm357 = vcmp.eq.s32.totalorder %v355, 0
    %v358 = vxor.u32 %v353, 2147483648
    %v359 = vsel %vm357, %v345, %v358
    %vm360 = vcmp.eq.s32.totalorder %v355, 2
    %v361 = vxor.u32 %v345, 2147483648
    %v362 = vsel %vm360, %v361, %v353
    %v363 = vsel %vm356, %v359, %v362
    %v364 = vsel %vm354, nan, %v363
    %v365 = vand.u32 2147483647, %v204
    %vm366 = vcmp.le.f32.partialorder %v365, 0.7853982
    %vm367 = vcmp.lt.s32.totalorder %v204, 0
    %v368 = vand.u32 %v204, 2139095040
    %v369 = vshrl.u32 %v368, 23
    %v370 = vsub.s32 %v369, 127
    %v371 = vand.u32 2147483647, %v204
    %v372 = vand.u32 %v371, 8388607
    %v373 = vor.u32 %v372, 8388608
    %v374 = vsub.s32 0, %v373
    %v375 = vadd.s32 %v370, 1
    %vm376 = vcmp.gt.s32.totalorder %v375, 0
    %v377 = vsel %vm376, %v375, 0
    %v378 = vshrl.u32 %v377, 5
    %v379 = vand.u32 %v377, 31
    %v380 = vsub.s32 32, %v379
    %v381 = vshrl.u32 683565275, %v380
    %v382 = vshll.u32 683565275, %v379
    %v383 = vshrl.u32 2475754826, %v380
    %v384 = vor.u32 %v382, %v383
    %v385 = vshll.u32 2475754826, %v379
    %v386 = vshrl.u32 2131351028, %v380
    %v387 = vor.u32 %v385, %v386
    %v388 = vshll.u32 2131351028, %v379
    %v389 = vshrl.u32 2102212464, %v380
    %v390 = vor.u32 %v388, %v389
    %v391 = vshll.u32 2102212464, %v379
    %v392 = vshrl.u32 920167782, %v380
    %v393 = vor.u32 %v391, %v392
    %v394 = vshll.u32 920167782, %v379
    %v395 = vshrl.u32 1326507024, %v380
    %v396 = vor.u32 %v394, %v395
    %vm397 = vcmp.lt.s32.totalorder %v378, 1
    %vm398 = vcmp.lt.s32.totalorder %v378, 2
    %vm399 = vcmp.lt.s32.totalorder %v378, 3
    %vm400 = vcmp.lt.s32.totalorder %v378, 4
    %v401 = vsel %vm397, %v381, %v384
    %v402 = vsel %vm400, %v390, 2102212464
    %v403 = vsel %vm399, %v387, %v402
    %v404 = vsel %vm398, %v401, %v403
    %v405 = vsel %vm397, %v384, %v387
    %v406 = vsel %vm400, %v393, 920167782
    %v407 = vsel %vm399, %v390, %v406
    %v408 = vsel %vm398, %v405, %v407
    %v409 = vsel %vm397, %v387, %v390
    %v410 = vsel %vm400, %v396, 1326507024
    %v411 = vsel %vm399, %v393, %v410
    %v412 = vsel %vm398, %v409, %v411
    %v413 = vshll.u32 %v373, 8
    %v414 = vand.u32 %v413, 65535
    %v415 = vshrl.u32 %v413, 16
    %v416 = vand.u32 %v412, 65535
    %v417 = vshrl.u32 %v412, 16
    %v418 = vmul.u32 %v414, %v416
    %v419 = vmul.u32 %v414, %v417
    %v420 = vmul.u32 %v415, %v416
    %v421 = vmul.u32 %v415, %v417
    %v422 = vshll.u32 %v419, 16
    %v423 = vshrl.u32 %v419, 16
    %v424 = vshll.u32 %v420, 16
    %v425 = vshrl.u32 %v420, 16
    %vm426 = vc.u32 %v418, %v422
    %v427 = vsel %vm426, 1, 0
    %v428 = vadd.s32 %v418, %v422
    %v429 = vadd.s32 %v421, %v427
    %vm430 = vc.u32 %v428, %v424
    %v431 = vsel %vm430, 1, 0
    %v432 = vadd.s32 %v428, %v424
    %v433 = vadd.s32 %v429, %v431
    %v434 = vadd.s32 %v433, %v423
    %v435 = vadd.s32 %v434, %v425
    %v436 = vand.u32 %v413, 65535
    %v437 = vshrl.u32 %v413, 16
    %v438 = vand.u32 %v408, 65535
    %v439 = vshrl.u32 %v408, 16
    %v440 = vmul.u32 %v436, %v438
    %v441 = vmul.u32 %v436, %v439
    %v442 = vmul.u32 %v437, %v438
    %v443 = vmul.u32 %v437, %v439
    %v444 = vshll.u32 %v441, 16
    %v445 = vshrl.u32 %v441, 16
    %v446 = vshll.u32 %v442, 16
    %v447 = vshrl.u32 %v442, 16
    %vm448 = vc.u32 %v440, %v444
    %v449 = vsel %vm448, 1, 0
    %v450 = vadd.s32 %v440, %v444
    %v451 = vadd.s32 %v443, %v449
    %vm452 = vc.u32 %v450, %v446
    %v453 = vsel %vm452, 1, 0
    %v454 = vadd.s32 %v450, %v446
    %v455 = vadd.s32 %v451, %v453
    %v456 = vadd.s32 %v455, %v445
    %v457 = vadd.s32 %v456, %v447
    %v458 = vmul.u32 %v413, %v404
    %v459 = vadd.s32 %v435, %v454
    %vm460 = vc.u32 %v435, %v454
    %v461 = vadd.s32 %v457, 1
    %v462 = vsel %vm460, %v461, %v457
    %v463 = vadd.s32 %v458, %v462
    %v464 = vadd.s32 %v463, 536870912
    %v465 = vshrl.u32 %v464, 30
    %v466 = vshll.u32 %v465, 30
    %v467 = vsub.s32 %v463, %v466
    %vm468 = vcmp.lt.s32.totalorder %v467, 0
    %v469 = vsub.s32 0, %v467
    %v470 = vsel %vm468, %v469, %v467
    %v471 = vclz %v470
    %v472 = vsub.s32 %v471, 2
    %vm473 = vcmp.gt.s32.totalorder 0, %v472
    %v474 = vsel %vm473, 0, %v472
    %v475 = vsub.s32 32, %v474
    %v476 = vshll.u32 %v467, %v474
    %v477 = vshrl.u32 %v459, %v475
    %v478 = vor.u32 %v476, %v477
    %v479 = vsub.s32 4294967266, %v474
    %v480 = vadd.s32 %v479, 127
    %v481 = vshll.u32 %v480, 23
    %v482 = vor.u32 4788187, %v481
    %v483 = vand.u32 2147483647, %v482
    %v485 = vcvt.s32.f32 %v478
    %v486 = vmul.f32 %v485, %v483
    %v487 = vxor.u32 %v486, 2147483648
    %v488 = vsel %vm367, %v487, %v486
    %v489 = vsub.s32 4, %v465
    %v490 = vsel %vm367, %v489, %v465
    %v491 = vsel %vm366, %v204, %v488
    %v492 = vsel %vm366, 0, %v490
    %v493 = vmul.f32 %v491, %v491
    %v494 = vmul.f32 %v493, -0.001358992
    %v495 = vadd.f32 %v494, 0.041655596
    %v496 = vmul.f32 %v493, %v495
    %v497 = vadd.f32 %v496, -0.4999988
    %v498 = vmul.f32 %v493, %v497
    %v499 = vadd.f32 1.0, %v498
    %v500 = vmul.f32 %v491, %v491
    %v501 = vmul.f32 %v500, -0.00019511016
    %v502 = vadd.f32 %v501, 0.008332121
    %v503 = vmul.f32 %v500, %v502
    %v504 = vadd.f32 %v503, -0.16666654
    %v505 = vmul.f32 %v500, %v504
    %v506 = vadd.f32 %v505, 1.0
    %v507 = vmul.f32 %v506, %v491
    %vm508 = vweird.f32 %v204
    %v509 = vand.u32 %v492, 3
    %vm510 = vcmp.lt.s32.totalorder %v509, 2
    %vm511 = vcmp.eq.s32.totalorder %v509, 0
    %v512 = vxor.u32 %v507, 2147483648
    %v513 = vsel %vm511, %v499, %v512
    %vm514 = vcmp.eq.s32.totalorder %v509, 2
    %v515 = vxor.u32 %v499, 2147483648
    %v516 = vsel %vm514, %v515, %v507
    %v517 = vsel %vm510, %v513, %v516
    %v518 = vsel %vm508, nan, %v517
    %v519 = vand.u32 2147483647, %v205
    %vm520 = vcmp.le.f32.partialorder %v519, 0.7853982
    %vm521 = vcmp.lt.s32.totalorder %v205, 0
    %v522 = vand.u32 %v205, 2139095040
    %v523 = vshrl.u32 %v522, 23
    %v524 = vsub.s32 %v523, 127
    %v525 = vand.u32 2147483647, %v205
    %v526 = vand.u32 %v525, 8388607
    %v527 = vor.u32 %v526, 8388608
    %v528 = vsub.s32 0, %v527
    %v529 = vadd.s32 %v524, 1
    %vm530 = vcmp.gt.s32.totalorder %v529, 0
    %v531 = vsel %vm530, %v529, 0
    %v532 = vshrl.u32 %v531, 5
    %v533 = vand.u32 %v531, 31
    %v534 = vsub.s32 32, %v533
    %v535 = vshrl.u32 683565275, %v534
    %v536 = vshll.u32 683565275, %v533
    %v537 = vshrl.u32 2475754826, %v534
    %v538 = vor.u32 %v536, %v537
    %v539 = vshll.u32 2475754826, %v533
    %v540 = vshrl.u32 2131351028, %v534
    %v541 = vor.u32 %v539, %v540
    %v542 = vshll.u32 2131351028, %v533
    %v543 = vshrl.u32 2102212464, %v534
    %v544 = vor.u32 %v542, %v543
    %v545 = vshll.u32 2102212464, %v533
    %v546 = vshrl.u32 920167782, %v534
    %v547 = vor.u32 %v545, %v546
    %v548 = vshll.u32 920167782, %v533
    %v549 = vshrl.u32 1326507024, %v534
    %v550 = vor.u32 %v548, %v549
    %vm551 = vcmp.lt.s32.totalorder %v532, 1
    %vm552 = vcmp.lt.s32.totalorder %v532, 2
    %vm553 = vcmp.lt.s32.totalorder %v532, 3
    %vm554 = vcmp.lt.s32.totalorder %v532, 4
    %v555 = vsel %vm551, %v535, %v538
    %v556 = vsel %vm554, %v544, 2102212464
    %v557 = vsel %vm553, %v541, %v556
    %v558 = vsel %vm552, %v555, %v557
    %v559 = vsel %vm551, %v538, %v541
    %v560 = vsel %vm554, %v547, 920167782
    %v561 = vsel %vm553, %v544, %v560
    %v562 = vsel %vm552, %v559, %v561
    %v563 = vsel %vm551, %v541, %v544
    %v564 = vsel %vm554, %v550, 1326507024
    %v565 = vsel %vm553, %v547, %v564
    %v566 = vsel %vm552, %v563, %v565
    %v567 = vshll.u32 %v527, 8
    %v568 = vand.u32 %v567, 65535
    %v569 = vshrl.u32 %v567, 16
    %v570 = vand.u32 %v566, 65535
    %v571 = vshrl.u32 %v566, 16
    %v572 = vmul.u32 %v568, %v570
    %v573 = vmul.u32 %v568, %v571
    %v574 = vmul.u32 %v569, %v570
    %v575 = vmul.u32 %v569, %v571
    %v576 = vshll.u32 %v573, 16
    %v577 = vshrl.u32 %v573, 16
    %v578 = vshll.u32 %v574, 16
    %v579 = vshrl.u32 %v574, 16
    %vm580 = vc.u32 %v572, %v576
    %v581 = vsel %vm580, 1, 0
    %v582 = vadd.s32 %v572, %v576
    %v583 = vadd.s32 %v575, %v581
    %vm584 = vc.u32 %v582, %v578
    %v585 = vsel %vm584, 1, 0
    %v586 = vadd.s32 %v582, %v578
    %v587 = vadd.s32 %v583, %v585
    %v588 = vadd.s32 %v587, %v577
    %v589 = vadd.s32 %v588, %v579
    %v590 = vand.u32 %v567, 65535
    %v591 = vshrl.u32 %v567, 16
    %v592 = vand.u32 %v562, 65535
    %v593 = vshrl.u32 %v562, 16
    %v594 = vmul.u32 %v590, %v592
    %v595 = vmul.u32 %v590, %v593
    %v596 = vmul.u32 %v591, %v592
    %v597 = vmul.u32 %v591, %v593
    %v598 = vshll.u32 %v595, 16
    %v599 = vshrl.u32 %v595, 16
    %v600 = vshll.u32 %v596, 16
    %v601 = vshrl.u32 %v596, 16
    %vm602 = vc.u32 %v594, %v598
    %v603 = vsel %vm602, 1, 0
    %v604 = vadd.s32 %v594, %v598
    %v605 = vadd.s32 %v597, %v603
    %vm606 = vc.u32 %v604, %v600
    %v607 = vsel %vm606, 1, 0
    %v608 = vadd.s32 %v604, %v600
    %v609 = vadd.s32 %v605, %v607
    %v610 = vadd.s32 %v609, %v599
    %v611 = vadd.s32 %v610, %v601
    %v612 = vmul.u32 %v567, %v558
    %v613 = vadd.s32 %v589, %v608
    %vm614 = vc.u32 %v589, %v608
    %v615 = vadd.s32 %v611, 1
    %v616 = vsel %vm614, %v615, %v611
    %v617 = vadd.s32 %v612, %v616
    %v618 = vadd.s32 %v617, 536870912
    %v619 = vshrl.u32 %v618, 30
    %v620 = vshll.u32 %v619, 30
    %v621 = vsub.s32 %v617, %v620
    %vm622 = vcmp.lt.s32.totalorder %v621, 0
    %v623 = vsub.s32 0, %v621
    %v624 = vsel %vm622, %v623, %v621
    %v625 = vclz %v624
    %v626 = vsub.s32 %v625, 2
    %vm627 = vcmp.gt.s32.totalorder 0, %v626
    %v628 = vsel %vm627, 0, %v626
    %v629 = vsub.s32 32, %v628
    %v630 = vshll.u32 %v621, %v628
    %v631 = vshrl.u32 %v613, %v629
    %v632 = vor.u32 %v630, %v631
    %v633 = vsub.s32 4294967266, %v628
    %v634 = vadd.s32 %v633, 127
    %v635 = vshll.u32 %v634, 23
    %v636 = vor.u32 4788187, %v635
    %v637 = vand.u32 2147483647, %v636
    %v639 = vcvt.s32.f32 %v632
    %v640 = vmul.f32 %v639, %v637
    %v641 = vxor.u32 %v640, 2147483648
    %v642 = vsel %vm521, %v641, %v640
    %v643 = vsub.s32 4, %v619
    %v644 = vsel %vm521, %v643, %v619
    %v645 = vsel %vm520, %v205, %v642
    %v646 = vsel %vm520, 0, %v644
    %v647 = vmul.f32 %v645, %v645
    %v648 = vmul.f32 %v647, -0.001358992
    %v649 = vadd.f32 %v648, 0.041655596
    %v650 = vmul.f32 %v647, %v649
    %v651 = vadd.f32 %v650, -0.4999988
    %v652 = vmul.f32 %v647, %v651
    %v653 = vadd.f32 1.0, %v652
    %v654 = vmul.f32 %v645, %v645
    %v655 = vmul.f32 %v654, -0.00019511016
    %v656 = vadd.f32 %v655, 0.008332121
    %v657 = vmul.f32 %v654, %v656
    %v658 = vadd.f32 %v657, -0.16666654
    %v659 = vmul.f32 %v654, %v658
    %v660 = vadd.f32 %v659, 1.0
    %v661 = vmul.f32 %v660, %v645
    %vm662 = vweird.f32 %v205
    %v663 = vand.u32 %v646, 3
    %vm664 = vcmp.lt.s32.totalorder %v663, 2
    %vm665 = vcmp.eq.s32.totalorder %v663, 0
    %v666 = vxor.u32 %v661, 2147483648
    %v667 = vsel %vm665, %v653, %v666
    %vm668 = vcmp.eq.s32.totalorder %v663, 2
    %v669 = vxor.u32 %v653, 2147483648
    %v670 = vsel %vm668, %v669, %v661
    %v671 = vsel %vm664, %v667, %v670
    %v672 = vsel %vm662, nan, %v671
    %v673 = vand.u32 2147483647, %v206
    %vm674 = vcmp.le.f32.partialorder %v673, 0.7853982
    %vm675 = vcmp.lt.s32.totalorder %v206, 0
    %v676 = vand.u32 %v206, 2139095040
    %v677 = vshrl.u32 %v676, 23
    %v678 = vsub.s32 %v677, 127
    %v679 = vand.u32 2147483647, %v206
    %v680 = vand.u32 %v679, 8388607
    %v681 = vor.u32 %v680, 8388608
    %v682 = vsub.s32 0, %v681
    %v683 = vadd.s32 %v678, 1
    %vm684 = vcmp.gt.s32.totalorder %v683, 0
    %v685 = vsel %vm684, %v683, 0
    %v686 = vshrl.u32 %v685, 5
    %v687 = vand.u32 %v685, 31
    %v688 = vsub.s32 32, %v687
    %v689 = vshrl.u32 683565275, %v688
    %v690 = vshll.u32 683565275, %v687
    %v691 = vshrl.u32 2475754826, %v688
    %v692 = vor.u32 %v690, %v691
    %v693 = vshll.u32 2475754826, %v687
    %v694 = vshrl.u32 2131351028, %v688
    %v695 = vor.u32 %v693, %v694
    %v696 = vshll.u32 2131351028, %v687
    %v697 = vshrl.u32 2102212464, %v688
    %v698 = vor.u32 %v696, %v697
    %v699 = vshll.u32 2102212464, %v687
    %v700 = vshrl.u32 920167782, %v688
    %v701 = vor.u32 %v699, %v700
    %v702 = vshll.u32 920167782, %v687
    %v703 = vshrl.u32 1326507024, %v688
    %v704 = vor.u32 %v702, %v703
    %vm705 = vcmp.lt.s32.totalorder %v686, 1
    %vm706 = vcmp.lt.s32.totalorder %v686, 2
    %vm707 = vcmp.lt.s32.totalorder %v686, 3
    %vm708 = vcmp.lt.s32.totalorder %v686, 4
    %v709 = vsel %vm705, %v689, %v692
    %v710 = vsel %vm708, %v698, 2102212464
    %v711 = vsel %vm707, %v695, %v710
    %v712 = vsel %vm706, %v709, %v711
    %v713 = vsel %vm705, %v692, %v695
    %v714 = vsel %vm708, %v701, 920167782
    %v715 = vsel %vm707, %v698, %v714
    %v716 = vsel %vm706, %v713, %v715
    %v717 = vsel %vm705, %v695, %v698
    %v718 = vsel %vm708, %v704, 1326507024
    %v719 = vsel %vm707, %v701, %v718
    %v720 = vsel %vm706, %v717, %v719
    %v721 = vshll.u32 %v681, 8
    %v722 = vand.u32 %v721, 65535
    %v723 = vshrl.u32 %v721, 16
    %v724 = vand.u32 %v720, 65535
    %v725 = vshrl.u32 %v720, 16
    %v726 = vmul.u32 %v722, %v724
    %v727 = vmul.u32 %v722, %v725
    %v728 = vmul.u32 %v723, %v724
    %v729 = vmul.u32 %v723, %v725
    %v730 = vshll.u32 %v727, 16
    %v731 = vshrl.u32 %v727, 16
    %v732 = vshll.u32 %v728, 16
    %v733 = vshrl.u32 %v728, 16
    %vm734 = vc.u32 %v726, %v730
    %v735 = vsel %vm734, 1, 0
    %v736 = vadd.s32 %v726, %v730
    %v737 = vadd.s32 %v729, %v735
    %vm738 = vc.u32 %v736, %v732
    %v739 = vsel %vm738, 1, 0
    %v740 = vadd.s32 %v736, %v732
    %v741 = vadd.s32 %v737, %v739
    %v742 = vadd.s32 %v741, %v731
    %v743 = vadd.s32 %v742, %v733
    %v744 = vand.u32 %v721, 65535
    %v745 = vshrl.u32 %v721, 16
    %v746 = vand.u32 %v716, 65535
    %v747 = vshrl.u32 %v716, 16
    %v748 = vmul.u32 %v744, %v746
    %v749 = vmul.u32 %v744, %v747
    %v750 = vmul.u32 %v745, %v746
    %v751 = vmul.u32 %v745, %v747
    %v752 = vshll.u32 %v749, 16
    %v753 = vshrl.u32 %v749, 16
    %v754 = vshll.u32 %v750, 16
    %v755 = vshrl.u32 %v750, 16
    %vm756 = vc.u32 %v748, %v752
    %v757 = vsel %vm756, 1, 0
    %v758 = vadd.s32 %v748, %v752
    %v759 = vadd.s32 %v751, %v757
    %vm760 = vc.u32 %v758, %v754
    %v761 = vsel %vm760, 1, 0
    %v762 = vadd.s32 %v758, %v754
    %v763 = vadd.s32 %v759, %v761
    %v764 = vadd.s32 %v763, %v753
    %v765 = vadd.s32 %v764, %v755
    %v766 = vmul.u32 %v721, %v712
    %v767 = vadd.s32 %v743, %v762
    %vm768 = vc.u32 %v743, %v762
    %v769 = vadd.s32 %v765, 1
    %v770 = vsel %vm768, %v769, %v765
    %v771 = vadd.s32 %v766, %v770
    %v772 = vadd.s32 %v771, 536870912
    %v773 = vshrl.u32 %v772, 30
    %v774 = vshll.u32 %v773, 30
    %v775 = vsub.s32 %v771, %v774
    %vm776 = vcmp.lt.s32.totalorder %v775, 0
    %v777 = vsub.s32 0, %v775
    %v778 = vsel %vm776, %v777, %v775
    %v779 = vclz %v778
    %v780 = vsub.s32 %v779, 2
    %vm781 = vcmp.gt.s32.totalorder 0, %v780
    %v782 = vsel %vm781, 0, %v780
    %v783 = vsub.s32 32, %v782
    %v784 = vshll.u32 %v775, %v782
    %v785 = vshrl.u32 %v767, %v783
    %v786 = vor.u32 %v784, %v785
    %v787 = vsub.s32 4294967266, %v782
    %v788 = vadd.s32 %v787, 127
    %v789 = vshll.u32 %v788, 23
    %v790 = vor.u32 4788187, %v789
    %v791 = vand.u32 2147483647, %v790
    %v793 = vcvt.s32.f32 %v786
    %v794 = vmul.f32 %v793, %v791
    %v795 = vxor.u32 %v794, 2147483648
    %v796 = vsel %vm675, %v795, %v794
    %v797 = vsub.s32 4, %v773
    %v798 = vsel %vm675, %v797, %v773
    %v799 = vsel %vm674, %v206, %v796
    %v800 = vsel %vm674, 0, %v798
    %v801 = vmul.f32 %v799, %v799
    %v802 = vmul.f32 %v801, -0.001358992
    %v803 = vadd.f32 %v802, 0.041655596
    %v804 = vmul.f32 %v801, %v803
    %v805 = vadd.f32 %v804, -0.4999988
    %v806 = vmul.f32 %v801, %v805
    %v807 = vadd.f32 1.0, %v806
    %v808 = vmul.f32 %v799, %v799
    %v809 = vmul.f32 %v808, -0.00019511016
    %v810 = vadd.f32 %v809, 0.008332121
    %v811 = vmul.f32 %v808, %v810
    %v812 = vadd.f32 %v811, -0.16666654
    %v813 = vmul.f32 %v808, %v812
    %v814 = vadd.f32 %v813, 1.0
    %v815 = vmul.f32 %v814, %v799
    %vm816 = vweird.f32 %v206
    %v817 = vand.u32 %v800, 3
    %vm818 = vcmp.lt.s32.totalorder %v817, 2
    %vm819 = vcmp.eq.s32.totalorder %v817, 0
    %v820 = vxor.u32 %v815, 2147483648
    %v821 = vsel %vm819, %v807, %v820
    %vm822 = vcmp.eq.s32.totalorder %v817, 2
    %v823 = vxor.u32 %v807, 2147483648
    %v824 = vsel %vm822, %v823, %v815
    %v825 = vsel %vm818, %v821, %v824
    %v826 = vsel %vm816, nan, %v825
    %v827 = vand.u32 2147483647, %v207
    %vm828 = vcmp.le.f32.partialorder %v827, 0.7853982
    %vm829 = vcmp.lt.s32.totalorder %v207, 0
    %v830 = vand.u32 %v207, 2139095040
    %v831 = vshrl.u32 %v830, 23
    %v832 = vsub.s32 %v831, 127
    %v833 = vand.u32 2147483647, %v207
    %v834 = vand.u32 %v833, 8388607
    %v835 = vor.u32 %v834, 8388608
    %v836 = vsub.s32 0, %v835
    %v837 = vadd.s32 %v832, 1
    %vm838 = vcmp.gt.s32.totalorder %v837, 0
    %v839 = vsel %vm838, %v837, 0
    %v840 = vshrl.u32 %v839, 5
    %v841 = vand.u32 %v839, 31
    %v842 = vsub.s32 32, %v841
    %v843 = vshrl.u32 683565275, %v842
    %v844 = vshll.u32 683565275, %v841
    %v845 = vshrl.u32 2475754826, %v842
    %v846 = vor.u32 %v844, %v845
    %v847 = vshll.u32 2475754826, %v841
    %v848 = vshrl.u32 2131351028, %v842
    %v849 = vor.u32 %v847, %v848
    %v850 = vshll.u32 2131351028, %v841
    %v851 = vshrl.u32 2102212464, %v842
    %v852 = vor.u32 %v850, %v851
    %v853 = vshll.u32 2102212464, %v841
    %v854 = vshrl.u32 920167782, %v842
    %v855 = vor.u32 %v853, %v854
    %v856 = vshll.u32 920167782, %v841
    %v857 = vshrl.u32 1326507024, %v842
    %v858 = vor.u32 %v856, %v857
    %vm859 = vcmp.lt.s32.totalorder %v840, 1
    %vm860 = vcmp.lt.s32.totalorder %v840, 2
    %vm861 = vcmp.lt.s32.totalorder %v840, 3
    %vm862 = vcmp.lt.s32.totalorder %v840, 4
    %v863 = vsel %vm859, %v843, %v846
    %v864 = vsel %vm862, %v852, 2102212464
    %v865 = vsel %vm861, %v849, %v864
    %v866 = vsel %vm860, %v863, %v865
    %v867 = vsel %vm859, %v846, %v849
    %v868 = vsel %vm862, %v855, 920167782
    %v869 = vsel %vm861, %v852, %v868
    %v870 = vsel %vm860, %v867, %v869
    %v871 = vsel %vm859, %v849, %v852
    %v872 = vsel %vm862, %v858, 1326507024
    %v873 = vsel %vm861, %v855, %v872
    %v874 = vsel %vm860, %v871, %v873
    %v875 = vshll.u32 %v835, 8
    %v876 = vand.u32 %v875, 65535
    %v877 = vshrl.u32 %v875, 16
    %v878 = vand.u32 %v874, 65535
    %v879 = vshrl.u32 %v874, 16
    %v880 = vmul.u32 %v876, %v878
    %v881 = vmul.u32 %v876, %v879
    %v882 = vmul.u32 %v877, %v878
    %v883 = vmul.u32 %v877, %v879
    %v884 = vshll.u32 %v881, 16
    %v885 = vshrl.u32 %v881, 16
    %v886 = vshll.u32 %v882, 16
    %v887 = vshrl.u32 %v882, 16
    %vm888 = vc.u32 %v880, %v884
    %v889 = vsel %vm888, 1, 0
    %v890 = vadd.s32 %v880, %v884
    %v891 = vadd.s32 %v883, %v889
    %vm892 = vc.u32 %v890, %v886
    %v893 = vsel %vm892, 1, 0
    %v894 = vadd.s32 %v890, %v886
    %v895 = vadd.s32 %v891, %v893
    %v896 = vadd.s32 %v895, %v885
    %v897 = vadd.s32 %v896, %v887
    %v898 = vand.u32 %v875, 65535
    %v899 = vshrl.u32 %v875, 16
    %v900 = vand.u32 %v870, 65535
    %v901 = vshrl.u32 %v870, 16
    %v902 = vmul.u32 %v898, %v900
    %v903 = vmul.u32 %v898, %v901
    %v904 = vmul.u32 %v899, %v900
    %v905 = vmul.u32 %v899, %v901
    %v906 = vshll.u32 %v903, 16
    %v907 = vshrl.u32 %v903, 16
    %v908 = vshll.u32 %v904, 16
    %v909 = vshrl.u32 %v904, 16
    %vm910 = vc.u32 %v902, %v906
    %v911 = vsel %vm910, 1, 0
    %v912 = vadd.s32 %v902, %v906
    %v913 = vadd.s32 %v905, %v911
    %vm914 = vc.u32 %v912, %v908
    %v915 = vsel %vm914, 1, 0
    %v916 = vadd.s32 %v912, %v908
    %v917 = vadd.s32 %v913, %v915
    %v918 = vadd.s32 %v917, %v907
    %v919 = vadd.s32 %v918, %v909
    %v920 = vmul.u32 %v875, %v866
    %v921 = vadd.s32 %v897, %v916
    %vm922 = vc.u32 %v897, %v916
    %v923 = vadd.s32 %v919, 1
    %v924 = vsel %vm922, %v923, %v919
    %v925 = vadd.s32 %v920, %v924
    %v926 = vadd.s32 %v925, 536870912
    %v927 = vshrl.u32 %v926, 30
    %v928 = vshll.u32 %v927, 30
    %v929 = vsub.s32 %v925, %v928
    %vm930 = vcmp.lt.s32.totalorder %v929, 0
    %v931 = vsub.s32 0, %v929
    %v932 = vsel %vm930, %v931, %v929
    %v933 = vclz %v932
    %v934 = vsub.s32 %v933, 2
    %vm935 = vcmp.gt.s32.totalorder 0, %v934
    %v936 = vsel %vm935, 0, %v934
    %v937 = vsub.s32 32, %v936
    %v938 = vshll.u32 %v929, %v936
    %v939 = vshrl.u32 %v921, %v937
    %v940 = vor.u32 %v938, %v939
    %v941 = vsub.s32 4294967266, %v936
    %v942 = vadd.s32 %v941, 127
    %v943 = vshll.u32 %v942, 23
    %v944 = vor.u32 4788187, %v943
    %v945 = vand.u32 2147483647, %v944
    %v947 = vcvt.s32.f32 %v940
    %v948 = vmul.f32 %v947, %v945
    %v949 = vxor.u32 %v948, 2147483648
    %v950 = vsel %vm829, %v949, %v948
    %v951 = vsub.s32 4, %v927
    %v952 = vsel %vm829, %v951, %v927
    %v953 = vsel %vm828, %v207, %v950
    %v954 = vsel %vm828, 0, %v952
    %v955 = vmul.f32 %v953, %v953
    %v956 = vmul.f32 %v955, -0.001358992
    %v957 = vadd.f32 %v956, 0.041655596
    %v958 = vmul.f32 %v955, %v957
    %v959 = vadd.f32 %v958, -0.4999988
    %v960 = vmul.f32 %v955, %v959
    %v961 = vadd.f32 1.0, %v960
    %v962 = vmul.f32 %v953, %v953
    %v963 = vmul.f32 %v962, -0.00019511016
    %v964 = vadd.f32 %v963, 0.008332121
    %v965 = vmul.f32 %v962, %v964
    %v966 = vadd.f32 %v965, -0.16666654
    %v967 = vmul.f32 %v962, %v966
    %v968 = vadd.f32 %v967, 1.0
    %v969 = vmul.f32 %v968, %v953
    %vm970 = vweird.f32 %v207
    %v971 = vand.u32 %v954, 3
    %vm972 = vcmp.lt.s32.totalorder %v971, 2
    %vm973 = vcmp.eq.s32.totalorder %v971, 0
    %v974 = vxor.u32 %v969, 2147483648
    %v975 = vsel %vm973, %v961, %v974
    %vm976 = vcmp.eq.s32.totalorder %v971, 2
    %v977 = vxor.u32 %v961, 2147483648
    %v978 = vsel %vm976, %v977, %v969
    %v979 = vsel %vm972, %v975, %v978
    %v980 = vsel %vm970, nan, %v979
    %v981 = vand.u32 2147483647, %v208
    %vm982 = vcmp.le.f32.partialorder %v981, 0.7853982
    %vm983 = vcmp.lt.s32.totalorder %v208, 0
    %v984 = vand.u32 %v208, 2139095040
    %v985 = vshrl.u32 %v984, 23
    %v986 = vsub.s32 %v985, 127
    %v987 = vand.u32 2147483647, %v208
    %v988 = vand.u32 %v987, 8388607
    %v989 = vor.u32 %v988, 8388608
    %v990 = vsub.s32 0, %v989
    %v991 = vadd.s32 %v986, 1
    %vm992 = vcmp.gt.s32.totalorder %v991, 0
    %v993 = vsel %vm992, %v991, 0
    %v994 = vshrl.u32 %v993, 5
    %v995 = vand.u32 %v993, 31
    %v996 = vsub.s32 32, %v995
    %v997 = vshrl.u32 683565275, %v996
    %v998 = vshll.u32 683565275, %v995
    %v999 = vshrl.u32 2475754826, %v996
    %v1000 = vor.u32 %v998, %v999
    %v1001 = vshll.u32 2475754826, %v995
    %v1002 = vshrl.u32 2131351028, %v996
    %v1003 = vor.u32 %v1001, %v1002
    %v1004 = vshll.u32 2131351028, %v995
    %v1005 = vshrl.u32 2102212464, %v996
    %v1006 = vor.u32 %v1004, %v1005
    %v1007 = vshll.u32 2102212464, %v995
    %v1008 = vshrl.u32 920167782, %v996
    %v1009 = vor.u32 %v1007, %v1008
    %v1010 = vshll.u32 920167782, %v995
    %v1011 = vshrl.u32 1326507024, %v996
    %v1012 = vor.u32 %v1010, %v1011
    %vm1013 = vcmp.lt.s32.totalorder %v994, 1
    %vm1014 = vcmp.lt.s32.totalorder %v994, 2
    %vm1015 = vcmp.lt.s32.totalorder %v994, 3
    %vm1016 = vcmp.lt.s32.totalorder %v994, 4
    %v1017 = vsel %vm1013, %v997, %v1000
    %v1018 = vsel %vm1016, %v1006, 2102212464
    %v1019 = vsel %vm1015, %v1003, %v1018
    %v1020 = vsel %vm1014, %v1017, %v1019
    %v1021 = vsel %vm1013, %v1000, %v1003
    %v1022 = vsel %vm1016, %v1009, 920167782
    %v1023 = vsel %vm1015, %v1006, %v1022
    %v1024 = vsel %vm1014, %v1021, %v1023
    %v1025 = vsel %vm1013, %v1003, %v1006
    %v1026 = vsel %vm1016, %v1012, 1326507024
    %v1027 = vsel %vm1015, %v1009, %v1026
    %v1028 = vsel %vm1014, %v1025, %v1027
    %v1029 = vshll.u32 %v989, 8
    %v1030 = vand.u32 %v1029, 65535
    %v1031 = vshrl.u32 %v1029, 16
    %v1032 = vand.u32 %v1028, 65535
    %v1033 = vshrl.u32 %v1028, 16
    %v1034 = vmul.u32 %v1030, %v1032
    %v1035 = vmul.u32 %v1030, %v1033
    %v1036 = vmul.u32 %v1031, %v1032
    %v1037 = vmul.u32 %v1031, %v1033
    %v1038 = vshll.u32 %v1035, 16
    %v1039 = vshrl.u32 %v1035, 16
    %v1040 = vshll.u32 %v1036, 16
    %v1041 = vshrl.u32 %v1036, 16
    %vm1042 = vc.u32 %v1034, %v1038
    %v1043 = vsel %vm1042, 1, 0
    %v1044 = vadd.s32 %v1034, %v1038
    %v1045 = vadd.s32 %v1037, %v1043
    %vm1046 = vc.u32 %v1044, %v1040
    %v1047 = vsel %vm1046, 1, 0
    %v1048 = vadd.s32 %v1044, %v1040
    %v1049 = vadd.s32 %v1045, %v1047
    %v1050 = vadd.s32 %v1049, %v1039
    %v1051 = vadd.s32 %v1050, %v1041
    %v1052 = vand.u32 %v1029, 65535
    %v1053 = vshrl.u32 %v1029, 16
    %v1054 = vand.u32 %v1024, 65535
    %v1055 = vshrl.u32 %v1024, 16
    %v1056 = vmul.u32 %v1052, %v1054
    %v1057 = vmul.u32 %v1052, %v1055
    %v1058 = vmul.u32 %v1053, %v1054
    %v1059 = vmul.u32 %v1053, %v1055
    %v1060 = vshll.u32 %v1057, 16
    %v1061 = vshrl.u32 %v1057, 16
    %v1062 = vshll.u32 %v1058, 16
    %v1063 = vshrl.u32 %v1058, 16
    %vm1064 = vc.u32 %v1056, %v1060
    %v1065 = vsel %vm1064, 1, 0
    %v1066 = vadd.s32 %v1056, %v1060
    %v1067 = vadd.s32 %v1059, %v1065
    %vm1068 = vc.u32 %v1066, %v1062
    %v1069 = vsel %vm1068, 1, 0
    %v1070 = vadd.s32 %v1066, %v1062
    %v1071 = vadd.s32 %v1067, %v1069
    %v1072 = vadd.s32 %v1071, %v1061
    %v1073 = vadd.s32 %v1072, %v1063
    %v1074 = vmul.u32 %v1029, %v1020
    %v1075 = vadd.s32 %v1051, %v1070
    %vm1076 = vc.u32 %v1051, %v1070
    %v1077 = vadd.s32 %v1073, 1
    %v1078 = vsel %vm1076, %v1077, %v1073
    %v1079 = vadd.s32 %v1074, %v1078
    %v1080 = vadd.s32 %v1079, 536870912
    %v1081 = vshrl.u32 %v1080, 30
    %v1082 = vshll.u32 %v1081, 30
    %v1083 = vsub.s32 %v1079, %v1082
    %vm1084 = vcmp.lt.s32.totalorder %v1083, 0
    %v1085 = vsub.s32 0, %v1083
    %v1086 = vsel %vm1084, %v1085, %v1083
    %v1087 = vclz %v1086
    %v1088 = vsub.s32 %v1087, 2
    %vm1089 = vcmp.gt.s32.totalorder 0, %v1088
    %v1090 = vsel %vm1089, 0, %v1088
    %v1091 = vsub.s32 32, %v1090
    %v1092 = vshll.u32 %v1083, %v1090
    %v1093 = vshrl.u32 %v1075, %v1091
    %v1094 = vor.u32 %v1092, %v1093
    %v1095 = vsub.s32 4294967266, %v1090
    %v1096 = vadd.s32 %v1095, 127
    %v1097 = vshll.u32 %v1096, 23
    %v1098 = vor.u32 4788187, %v1097
    %v1099 = vand.u32 2147483647, %v1098
    %v1101 = vcvt.s32.f32 %v1094
    %v1102 = vmul.f32 %v1101, %v1099
    %v1103 = vxor.u32 %v1102, 2147483648
    %v1104 = vsel %vm983, %v1103, %v1102
    %v1105 = vsub.s32 4, %v1081
    %v1106 = vsel %vm983, %v1105, %v1081
    %v1107 = vsel %vm982, %v208, %v1104
    %v1108 = vsel %vm982, 0, %v1106
    %v1109 = vmul.f32 %v1107, %v1107
    %v1110 = vmul.f32 %v1109, -0.001358992
    %v1111 = vadd.f32 %v1110, 0.041655596
    %v1112 = vmul.f32 %v1109, %v1111
    %v1113 = vadd.f32 %v1112, -0.4999988
    %v1114 = vmul.f32 %v1109, %v1113
    %v1115 = vadd.f32 1.0, %v1114
    %v1116 = vmul.f32 %v1107, %v1107
    %v1117 = vmul.f32 %v1116, -0.00019511016
    %v1118 = vadd.f32 %v1117, 0.008332121
    %v1119 = vmul.f32 %v1116, %v1118
    %v1120 = vadd.f32 %v1119, -0.16666654
    %v1121 = vmul.f32 %v1116, %v1120
    %v1122 = vadd.f32 %v1121, 1.0
    %v1123 = vmul.f32 %v1122, %v1107
    %vm1124 = vweird.f32 %v208
    %v1125 = vand.u32 %v1108, 3
    %vm1126 = vcmp.lt.s32.totalorder %v1125, 2
    %vm1127 = vcmp.eq.s32.totalorder %v1125, 0
    %v1128 = vxor.u32 %v1123, 2147483648
    %v1129 = vsel %vm1127, %v1115, %v1128
    %vm1130 = vcmp.eq.s32.totalorder %v1125, 2
    %v1131 = vxor.u32 %v1115, 2147483648
    %v1132 = vsel %vm1130, %v1131, %v1123
    %v1133 = vsel %vm1126, %v1129, %v1132
    %v1134 = vsel %vm1124, nan, %v1133
    %v1135 = vand.u32 2147483647, %v209
    %vm1136 = vcmp.le.f32.partialorder %v1135, 0.7853982
    %vm1137 = vcmp.lt.s32.totalorder %v209, 0
    %v1138 = vand.u32 %v209, 2139095040
    %v1139 = vshrl.u32 %v1138, 23
    %v1140 = vsub.s32 %v1139, 127
    %v1141 = vand.u32 2147483647, %v209
    %v1142 = vand.u32 %v1141, 8388607
    %v1143 = vor.u32 %v1142, 8388608
    %v1144 = vsub.s32 0, %v1143
    %v1145 = vadd.s32 %v1140, 1
    %vm1146 = vcmp.gt.s32.totalorder %v1145, 0
    %v1147 = vsel %vm1146, %v1145, 0
    %v1148 = vshrl.u32 %v1147, 5
    %v1149 = vand.u32 %v1147, 31
    %v1150 = vsub.s32 32, %v1149
    %v1151 = vshrl.u32 683565275, %v1150
    %v1152 = vshll.u32 683565275, %v1149
    %v1153 = vshrl.u32 2475754826, %v1150
    %v1154 = vor.u32 %v1152, %v1153
    %v1155 = vshll.u32 2475754826, %v1149
    %v1156 = vshrl.u32 2131351028, %v1150
    %v1157 = vor.u32 %v1155, %v1156
    %v1158 = vshll.u32 2131351028, %v1149
    %v1159 = vshrl.u32 2102212464, %v1150
    %v1160 = vor.u32 %v1158, %v1159
    %v1161 = vshll.u32 2102212464, %v1149
    %v1162 = vshrl.u32 920167782, %v1150
    %v1163 = vor.u32 %v1161, %v1162
    %v1164 = vshll.u32 920167782, %v1149
    %v1165 = vshrl.u32 1326507024, %v1150
    %v1166 = vor.u32 %v1164, %v1165
    %vm1167 = vcmp.lt.s32.totalorder %v1148, 1
    %vm1168 = vcmp.lt.s32.totalorder %v1148, 2
    %vm1169 = vcmp.lt.s32.totalorder %v1148, 3
    %vm1170 = vcmp.lt.s32.totalorder %v1148, 4
    %v1171 = vsel %vm1167, %v1151, %v1154
    %v1172 = vsel %vm1170, %v1160, 2102212464
    %v1173 = vsel %vm1169, %v1157, %v1172
    %v1174 = vsel %vm1168, %v1171, %v1173
    %v1175 = vsel %vm1167, %v1154, %v1157
    %v1176 = vsel %vm1170, %v1163, 920167782
    %v1177 = vsel %vm1169, %v1160, %v1176
    %v1178 = vsel %vm1168, %v1175, %v1177
    %v1179 = vsel %vm1167, %v1157, %v1160
    %v1180 = vsel %vm1170, %v1166, 1326507024
    %v1181 = vsel %vm1169, %v1163, %v1180
    %v1182 = vsel %vm1168, %v1179, %v1181
    %v1183 = vshll.u32 %v1143, 8
    %v1184 = vand.u32 %v1183, 65535
    %v1185 = vshrl.u32 %v1183, 16
    %v1186 = vand.u32 %v1182, 65535
    %v1187 = vshrl.u32 %v1182, 16
    %v1188 = vmul.u32 %v1184, %v1186
    %v1189 = vmul.u32 %v1184, %v1187
    %v1190 = vmul.u32 %v1185, %v1186
    %v1191 = vmul.u32 %v1185, %v1187
    %v1192 = vshll.u32 %v1189, 16
    %v1193 = vshrl.u32 %v1189, 16
    %v1194 = vshll.u32 %v1190, 16
    %v1195 = vshrl.u32 %v1190, 16
    %vm1196 = vc.u32 %v1188, %v1192
    %v1197 = vsel %vm1196, 1, 0
    %v1198 = vadd.s32 %v1188, %v1192
    %v1199 = vadd.s32 %v1191, %v1197
    %vm1200 = vc.u32 %v1198, %v1194
    %v1201 = vsel %vm1200, 1, 0
    %v1202 = vadd.s32 %v1198, %v1194
    %v1203 = vadd.s32 %v1199, %v1201
    %v1204 = vadd.s32 %v1203, %v1193
    %v1205 = vadd.s32 %v1204, %v1195
    %v1206 = vand.u32 %v1183, 65535
    %v1207 = vshrl.u32 %v1183, 16
    %v1208 = vand.u32 %v1178, 65535
    %v1209 = vshrl.u32 %v1178, 16
    %v1210 = vmul.u32 %v1206, %v1208
    %v1211 = vmul.u32 %v1206, %v1209
    %v1212 = vmul.u32 %v1207, %v1208
    %v1213 = vmul.u32 %v1207, %v1209
    %v1214 = vshll.u32 %v1211, 16
    %v1215 = vshrl.u32 %v1211, 16
    %v1216 = vshll.u32 %v1212, 16
    %v1217 = vshrl.u32 %v1212, 16
    %vm1218 = vc.u32 %v1210, %v1214
    %v1219 = vsel %vm1218, 1, 0
    %v1220 = vadd.s32 %v1210, %v1214
    %v1221 = vadd.s32 %v1213, %v1219
    %vm1222 = vc.u32 %v1220, %v1216
    %v1223 = vsel %vm1222, 1, 0
    %v1224 = vadd.s32 %v1220, %v1216
    %v1225 = vadd.s32 %v1221, %v1223
    %v1226 = vadd.s32 %v1225, %v1215
    %v1227 = vadd.s32 %v1226, %v1217
    %v1228 = vmul.u32 %v1183, %v1174
    %v1229 = vadd.s32 %v1205, %v1224
    %vm1230 = vc.u32 %v1205, %v1224
    %v1231 = vadd.s32 %v1227, 1
    %v1232 = vsel %vm1230, %v1231, %v1227
    %v1233 = vadd.s32 %v1228, %v1232
    %v1234 = vadd.s32 %v1233, 536870912
    %v1235 = vshrl.u32 %v1234, 30
    %v1236 = vshll.u32 %v1235, 30
    %v1237 = vsub.s32 %v1233, %v1236
    %vm1238 = vcmp.lt.s32.totalorder %v1237, 0
    %v1239 = vsub.s32 0, %v1237
    %v1240 = vsel %vm1238, %v1239, %v1237
    %v1241 = vclz %v1240
    %v1242 = vsub.s32 %v1241, 2
    %vm1243 = vcmp.gt.s32.totalorder 0, %v1242
    %v1244 = vsel %vm1243, 0, %v1242
    %v1245 = vsub.s32 32, %v1244
    %v1246 = vshll.u32 %v1237, %v1244
    %v1247 = vshrl.u32 %v1229, %v1245
    %v1248 = vor.u32 %v1246, %v1247
    %v1249 = vsub.s32 4294967266, %v1244
    %v1250 = vadd.s32 %v1249, 127
    %v1251 = vshll.u32 %v1250, 23
    %v1252 = vor.u32 4788187, %v1251
    %v1253 = vand.u32 2147483647, %v1252
    %v1255 = vcvt.s32.f32 %v1248
    %v1256 = vmul.f32 %v1255, %v1253
    %v1257 = vxor.u32 %v1256, 2147483648
    %v1258 = vsel %vm1137, %v1257, %v1256
    %v1259 = vsub.s32 4, %v1235
    %v1260 = vsel %vm1137, %v1259, %v1235
    %v1261 = vsel %vm1136, %v209, %v1258
    %v1262 = vsel %vm1136, 0, %v1260
    %v1263 = vmul.f32 %v1261, %v1261
    %v1264 = vmul.f32 %v1263, -0.001358992
    %v1265 = vadd.f32 %v1264, 0.041655596
    %v1266 = vmul.f32 %v1263, %v1265
    %v1267 = vadd.f32 %v1266, -0.4999988
    %v1268 = vmul.f32 %v1263, %v1267
    %v1269 = vadd.f32 1.0, %v1268
    %v1270 = vmul.f32 %v1261, %v1261
    %v1271 = vmul.f32 %v1270, -0.00019511016
    %v1272 = vadd.f32 %v1271, 0.008332121
    %v1273 = vmul.f32 %v1270, %v1272
    %v1274 = vadd.f32 %v1273, -0.16666654
    %v1275 = vmul.f32 %v1270, %v1274
    %v1276 = vadd.f32 %v1275, 1.0
    %v1277 = vmul.f32 %v1276, %v1261
    %vm1278 = vweird.f32 %v209
    %v1279 = vand.u32 %v1262, 3
    %vm1280 = vcmp.lt.s32.totalorder %v1279, 2
    %vm1281 = vcmp.eq.s32.totalorder %v1279, 0
    %v1282 = vxor.u32 %v1277, 2147483648
    %v1283 = vsel %vm1281, %v1269, %v1282
    %vm1284 = vcmp.eq.s32.totalorder %v1279, 2
    %v1285 = vxor.u32 %v1269, 2147483648
    %v1286 = vsel %vm1284, %v1285, %v1277
    %v1287 = vsel %vm1280, %v1283, %v1286
    %v1288 = vsel %vm1278, nan, %v1287
    %v1289 = vand.u32 2147483647, %v210
    %vm1290 = vcmp.le.f32.partialorder %v1289, 0.7853982
    %vm1291 = vcmp.lt.s32.totalorder %v210, 0
    %v1292 = vand.u32 %v210, 2139095040
    %v1293 = vshrl.u32 %v1292, 23
    %v1294 = vsub.s32 %v1293, 127
    %v1295 = vand.u32 2147483647, %v210
    %v1296 = vand.u32 %v1295, 8388607
    %v1297 = vor.u32 %v1296, 8388608
    %v1298 = vsub.s32 0, %v1297
    %v1299 = vadd.s32 %v1294, 1
    %vm1300 = vcmp.gt.s32.totalorder %v1299, 0
    %v1301 = vsel %vm1300, %v1299, 0
    %v1302 = vshrl.u32 %v1301, 5
    %v1303 = vand.u32 %v1301, 31
    %v1304 = vsub.s32 32, %v1303
    %v1305 = vshrl.u32 683565275, %v1304
    %v1306 = vshll.u32 683565275, %v1303
    %v1307 = vshrl.u32 2475754826, %v1304
    %v1308 = vor.u32 %v1306, %v1307
    %v1309 = vshll.u32 2475754826, %v1303
    %v1310 = vshrl.u32 2131351028, %v1304
    %v1311 = vor.u32 %v1309, %v1310
    %v1312 = vshll.u32 2131351028, %v1303
    %v1313 = vshrl.u32 2102212464, %v1304
    %v1314 = vor.u32 %v1312, %v1313
    %v1315 = vshll.u32 2102212464, %v1303
    %v1316 = vshrl.u32 920167782, %v1304
    %v1317 = vor.u32 %v1315, %v1316
    %v1318 = vshll.u32 920167782, %v1303
    %v1319 = vshrl.u32 1326507024, %v1304
    %v1320 = vor.u32 %v1318, %v1319
    %vm1321 = vcmp.lt.s32.totalorder %v1302, 1
    %vm1322 = vcmp.lt.s32.totalorder %v1302, 2
    %vm1323 = vcmp.lt.s32.totalorder %v1302, 3
    %vm1324 = vcmp.lt.s32.totalorder %v1302, 4
    %v1325 = vsel %vm1321, %v1305, %v1308
    %v1326 = vsel %vm1324, %v1314, 2102212464
    %v1327 = vsel %vm1323, %v1311, %v1326
    %v1328 = vsel %vm1322, %v1325, %v1327
    %v1329 = vsel %vm1321, %v1308, %v1311
    %v1330 = vsel %vm1324, %v1317, 920167782
    %v1331 = vsel %vm1323, %v1314, %v1330
    %v1332 = vsel %vm1322, %v1329, %v1331
    %v1333 = vsel %vm1321, %v1311, %v1314
    %v1334 = vsel %vm1324, %v1320, 1326507024
    %v1335 = vsel %vm1323, %v1317, %v1334
    %v1336 = vsel %vm1322, %v1333, %v1335
    %v1337 = vshll.u32 %v1297, 8
    %v1338 = vand.u32 %v1337, 65535
    %v1339 = vshrl.u32 %v1337, 16
    %v1340 = vand.u32 %v1336, 65535
    %v1341 = vshrl.u32 %v1336, 16
    %v1342 = vmul.u32 %v1338, %v1340
    %v1343 = vmul.u32 %v1338, %v1341
    %v1344 = vmul.u32 %v1339, %v1340
    %v1345 = vmul.u32 %v1339, %v1341
    %v1346 = vshll.u32 %v1343, 16
    %v1347 = vshrl.u32 %v1343, 16
    %v1348 = vshll.u32 %v1344, 16
    %v1349 = vshrl.u32 %v1344, 16
    %vm1350 = vc.u32 %v1342, %v1346
    %v1351 = vsel %vm1350, 1, 0
    %v1352 = vadd.s32 %v1342, %v1346
    %v1353 = vadd.s32 %v1345, %v1351
    %vm1354 = vc.u32 %v1352, %v1348
    %v1355 = vsel %vm1354, 1, 0
    %v1356 = vadd.s32 %v1352, %v1348
    %v1357 = vadd.s32 %v1353, %v1355
    %v1358 = vadd.s32 %v1357, %v1347
    %v1359 = vadd.s32 %v1358, %v1349
    %v1360 = vand.u32 %v1337, 65535
    %v1361 = vshrl.u32 %v1337, 16
    %v1362 = vand.u32 %v1332, 65535
    %v1363 = vshrl.u32 %v1332, 16
    %v1364 = vmul.u32 %v1360, %v1362
    %v1365 = vmul.u32 %v1360, %v1363
    %v1366 = vmul.u32 %v1361, %v1362
    %v1367 = vmul.u32 %v1361, %v1363
    %v1368 = vshll.u32 %v1365, 16
    %v1369 = vshrl.u32 %v1365, 16
    %v1370 = vshll.u32 %v1366, 16
    %v1371 = vshrl.u32 %v1366, 16
    %vm1372 = vc.u32 %v1364, %v1368
    %v1373 = vsel %vm1372, 1, 0
    %v1374 = vadd.s32 %v1364, %v1368
    %v1375 = vadd.s32 %v1367, %v1373
    %vm1376 = vc.u32 %v1374, %v1370
    %v1377 = vsel %vm1376, 1, 0
    %v1378 = vadd.s32 %v1374, %v1370
    %v1379 = vadd.s32 %v1375, %v1377
    %v1380 = vadd.s32 %v1379, %v1369
    %v1381 = vadd.s32 %v1380, %v1371
    %v1382 = vmul.u32 %v1337, %v1328
    %v1383 = vadd.s32 %v1359, %v1378
    %vm1384 = vc.u32 %v1359, %v1378
    %v1385 = vadd.s32 %v1381, 1
    %v1386 = vsel %vm1384, %v1385, %v1381
    %v1387 = vadd.s32 %v1382, %v1386
    %v1388 = vadd.s32 %v1387, 536870912
    %v1389 = vshrl.u32 %v1388, 30
    %v1390 = vshll.u32 %v1389, 30
    %v1391 = vsub.s32 %v1387, %v1390
    %vm1392 = vcmp.lt.s32.totalorder %v1391, 0
    %v1393 = vsub.s32 0, %v1391
    %v1394 = vsel %vm1392, %v1393, %v1391
    %v1395 = vclz %v1394
    %v1396 = vsub.s32 %v1395, 2
    %vm1397 = vcmp.gt.s32.totalorder 0, %v1396
    %v1398 = vsel %vm1397, 0, %v1396
    %v1399 = vsub.s32 32, %v1398
    %v1400 = vshll.u32 %v1391, %v1398
    %v1401 = vshrl.u32 %v1383, %v1399
    %v1402 = vor.u32 %v1400, %v1401
    %v1403 = vsub.s32 4294967266, %v1398
    %v1404 = vadd.s32 %v1403, 127
    %v1405 = vshll.u32 %v1404, 23
    %v1406 = vor.u32 4788187, %v1405
    %v1407 = vand.u32 2147483647, %v1406
    %v1409 = vcvt.s32.f32 %v1402
    %v1410 = vmul.f32 %v1409, %v1407
    %v1411 = vxor.u32 %v1410, 2147483648
    %v1412 = vsel %vm1291, %v1411, %v1410
    %v1413 = vsub.s32 4, %v1389
    %v1414 = vsel %vm1291, %v1413, %v1389
    %v1415 = vsel %vm1290, %v210, %v1412
    %v1416 = vsel %vm1290, 0, %v1414
    %v1417 = vmul.f32 %v1415, %v1415
    %v1418 = vmul.f32 %v1417, -0.001358992
    %v1419 = vadd.f32 %v1418, 0.041655596
    %v1420 = vmul.f32 %v1417, %v1419
    %v1421 = vadd.f32 %v1420, -0.4999988
    %v1422 = vmul.f32 %v1417, %v1421
    %v1423 = vadd.f32 1.0, %v1422
    %v1424 = vmul.f32 %v1415, %v1415
    %v1425 = vmul.f32 %v1424, -0.00019511016
    %v1426 = vadd.f32 %v1425, 0.008332121
    %v1427 = vmul.f32 %v1424, %v1426
    %v1428 = vadd.f32 %v1427, -0.16666654
    %v1429 = vmul.f32 %v1424, %v1428
    %v1430 = vadd.f32 %v1429, 1.0
    %v1431 = vmul.f32 %v1430, %v1415
    %vm1432 = vweird.f32 %v210
    %v1433 = vand.u32 %v1416, 3
    %vm1434 = vcmp.lt.s32.totalorder %v1433, 2
    %vm1435 = vcmp.eq.s32.totalorder %v1433, 0
    %v1436 = vxor.u32 %v1431, 2147483648
    %v1437 = vsel %vm1435, %v1423, %v1436
    %vm1438 = vcmp.eq.s32.totalorder %v1433, 2
    %v1439 = vxor.u32 %v1423, 2147483648
    %v1440 = vsel %vm1438, %v1439, %v1431
    %v1441 = vsel %vm1434, %v1437, %v1440
    %v1442 = vsel %vm1432, nan, %v1441
    %v1443 = vperm.slane %v67, 1
    %v1444 = vmul.f32 %v1443, %v364
    %v1445 = vmul.f32 %v1443, %v518
    %v1446 = vmul.f32 %v1443, %v672
    %v1447 = vmul.f32 %v1443, %v826
    %v1448 = vmul.f32 %v1443, %v980
    %v1449 = vmul.f32 %v1443, %v1134
    %v1450 = vmul.f32 %v1443, %v1288
    %v1451 = vmul.f32 %v1443, %v1442
    %v1452 = vadd.f32 %v1444, %v171
    %v1453 = vadd.f32 %v1445, %v174
    %v1454 = vadd.f32 %v1446, %v177
    %v1455 = vadd.f32 %v1447, %v180
    %v1456 = vadd.f32 %v1448, %v183
    %v1457 = vadd.f32 %v1449, %v186
    %v1458 = vadd.f32 %v1450, %v189
    %v1459 = vadd.f32 %v1451, %v192
    %1460 = vst [vmem:[#allocation7] sm:$0xff] %v1452
    %1461 = vst [vmem:[#allocation7 + $0x8] sm:$0xff] %v1453
    %1462 = vst [vmem:[#allocation7 + $0x10] sm:$0xff] %v1454
    %1463 = vst [vmem:[#allocation7 + $0x18] sm:$0xff] %v1455
    %1464 = vst [vmem:[#allocation7 + $0x20] sm:$0xff] %v1456
    %1465 = vst [vmem:[#allocation7 + $0x28] sm:$0xff] %v1457
    %1466 = vst [vmem:[#allocation7 + $0x30] sm:$0xff] %v1458
    %1467 = vst [vmem:[#allocation7 + $0x38] sm:$0xff] %v1459
    // Predicated region
    $region30: #{tpu_custom_call.1} parent=1 // pred_check
      _
    $region31: #{tpu_custom_call.1} parent=1 // pred_check_branch
      %1469 = sbr.rel (0) target = $region33
    $region32: #{tpu_custom_call.1} parent=1 // pred_region
      %1471 = vsyncadd [#allocation4], 0
      %s1472 = sshll.u32 [#allocation7], 4
      %s1473 = int_to_ptr.vmem [resolvable:$true] %s1472
      %s1474 = sshll.u32 %s5, 4
      %s1475 = int_to_ptr.hbm [resolvable:$true] %s1474
      %1480 = dma.vmem_to_hbm [thread:$0]  %s1473, 1024, %s1475, [#allocation4], 128, 128, 8
    $region33: #{tpu_custom_call.1} parent=1 // pred_fallthru
      _
    // Predicated region
    $region34: #{tpu_custom_call.1} parent=1 // pred_check
      _
    $region35: #{tpu_custom_call.1} parent=1 // pred_check_branch
      %1482 = sbr.rel (0) target = $region37
    $region36: #{tpu_custom_call.1} parent=1 // pred_region
      %1484 = dma.done [#allocation4], 1024
    $region37: #{tpu_custom_call.1} parent=1 // pred_fallthru
      _
    %1485 = vsyncpa [#allocation3], 1
    %1486 = vsyncpa [#allocation6], 1
    %1487 = vsyncpa [#allocation4], 1

</llo_original>
